<compile_context>
chip_gen: v5e
topology: v5e:2x2
jax: 0.10.0
libtpu: 0.0.40
codegen_flags: <defaults>
</compile_context>

<pallas_src>
import jax
import jax.numpy as jnp
from jax.experimental import pallas as pl
from jax.experimental.pallas import tpu as pltpu


# ---------------------------------------------------------------------------
# Fused Pallas kernel (built per static layer configuration)
# ---------------------------------------------------------------------------
def make_encoder_kernel(B, L_in, blocks_cfg, K):
    """blocks_cfg: list of blocks; each block is a list of (cin, cout) conv layers.
    A MaxPool1d(2) follows each block; a flatten follows the last block."""
    pad_l = (K - 1) // 2          # PyTorch 'same' left pad
    pad_r = (K - 1) - pad_l       # PyTorch 'same' right pad
    c_in0 = blocks_cfg[0][0][0]

    def kernel(w_ref, b_ref, x_ref, o_ref):
        # w_ref : SMEM f32[sum(cout*cin*K)]  all conv weights (PyTorch [O,I,K] order)
        # b_ref : SMEM f32[sum(cout)]        all biases
        # x_ref : VMEM f32[B, Cin0, L]       input activations (PyTorch NCL layout)
        # o_ref : VMEM f32[B, Cfin*Lfin]     flattened encoder output
        #
        # Per-channel activations are [B, l] and stay vreg-resident for the whole
        # forward pass (total live activations < 1 KiB at these shapes).
        chans = [x_ref[:, c, :] for c in range(c_in0)]
        l = L_in
        w_off = 0
        b_off = 0
        for block in blocks_cfg:
            for (cin, cout) in block:
                # ---- Conv1d(k=K, stride=1, 'same') + bias + ReLU ----------------
                # Guaranteed-traced zero halos (never close over concrete arrays,
                # which would retrigger the "captures constants" error).
                zl = chans[0][:, :pad_l] * 0.0 if pad_l else None
                zr = chans[0][:, :pad_r] * 0.0 if pad_r else None
                # Hoisted shifted taps (reused by every output channel):
                #   taps[c][k][b, i] = x_padded[b, c, i + k]
                taps = []
                for c in range(cin):
                    pieces = ([zl] if pad_l else []) + [chans[c]] + ([zr] if pad_r else [])
                    xp = jnp.concatenate(pieces, axis=-1) if len(pieces) > 1 else chans[c]
                    taps.append([xp[:, k:k + l] for k in range(K)])
                new_chans = []
                for o in range(cout):                      # fully unrolled VPU MACs
                    # init: first tap product with the bias folded in
                    acc = taps[0][0] * w_ref[w_off + (o * cin) * K] + b_ref[b_off + o]
                    for c in range(cin):
                        for k in range(K):
                            if c == 0 and k == 0:
                                continue
                            w = w_ref[w_off + (o * cin + c) * K + k]   # SMEM scalar
                            acc = acc + w * taps[c][k]
                    new_chans.append(jnp.maximum(acc, 0.0))           # ReLU
                chans = new_chans
                w_off += cout * cin * K
                b_off += cout
            # ---- MaxPool1d(kernel=2, stride=2) ---------------------------------
            # Pairwise max with the next lane, then compact the even lanes using
            # only unit-stride slices + concatenate (safe to lower on all chips;
            # value-level strided slices are not).
            lp = l // 2
            pooled = []
            for y in chans:
                y_next = jnp.concatenate([y[:, 1:], y[:, :1] * 0.0], axis=-1)
                m = jnp.maximum(y, y_next)            # m[:, 2r] holds pooled value r
                pooled.append(
                    jnp.concatenate([m[:, 2 * r:2 * r + 1] for r in range(lp)],
                                    axis=-1))
            chans = pooled
            l = lp
        # ---- Flatten: single lane-dense store (PyTorch .view(B, -1) order) ------
        o_ref[...] = jnp.concatenate(chans, axis=-1)

    return kernel


# ---------------------------------------------------------------------------
# Wrapper: one pallas_call for the whole encoder
# ---------------------------------------------------------------------------
def encoder_forward(x, params):
    """x: [B, Cin, L]; params: list of blocks, each a list of (w [Cout,Cin,K], b [Cout])."""
    B, _, L = x.shape
    K = params[0][0][0].shape[2]
    blocks_cfg = [[(w.shape[1], w.shape[0]) for (w, _) in blk] for blk in params]
    n_blocks = len(params)
    assert L % (2 ** n_blocks) == 0, "length must be divisible by 2**num_blocks"
    c_fin = blocks_cfg[-1][-1][1]
    l_fin = L // (2 ** n_blocks)

    w_flat = jnp.concatenate(
        [w.reshape(-1) for blk in params for (w, _) in blk]).astype(jnp.float32)
    b_flat = jnp.concatenate(
        [b.reshape(-1) for blk in params for (_, b) in blk]).astype(jnp.float32)

    kernel = make_encoder_kernel(B, L, blocks_cfg, K)
    # TODO(synk): when B/L scale up, add a batch grid axis (per-array BlockSpecs
    # with an index_map over batch tiles) and dimension_semantics=("parallel",)
    # so both v7x TensorCores get work; pack >=8 batch rows per tile to fill vreg
    # sublanes, and re-derive tile sizes against v7x's 64 MiB VMEM (vs 128 MiB
    # on v5e/v6e).
    # TODO(synk): if hidden_dims/K ever grow (>=32 channels), swap the unrolled
    # VPU MAC loop for an im2col jnp.dot on the MXU and consider bf16 activations
    # on v6e/v7x (keep f32 on v5e).
    return pl.pallas_call(
        kernel,
        out_shape=jax.ShapeDtypeStruct((B, c_fin * l_fin), jnp.float32),
        in_specs=[
            pl.BlockSpec(memory_space=pltpu.MemorySpace.SMEM),   # conv weights (scalars)
            pl.BlockSpec(memory_space=pltpu.MemorySpace.SMEM),   # conv biases  (scalars)
            pl.BlockSpec(memory_space=pltpu.MemorySpace.VMEM),   # input activations
        ],
        out_specs=pl.BlockSpec(memory_space=pltpu.MemorySpace.VMEM),
    )(w_flat, b_flat, x.astype(jnp.float32))


# ---------------------------------------------------------------------------
# Pure-JAX reference (for correctness check)
# ---------------------------------------------------------------------------
def encoder_reference(x, params):
    for block in params:
        for (w, b) in block:
            y = jax.lax.conv_general_dilated(
                x, w, window_strides=(1,), padding="SAME",
                dimension_numbers=("NCH", "OIH", "NCH"))
            x = jnp.maximum(y + b[None, :, None], 0.0)
        B, C, L = x.shape
        x = x.reshape(B, C, L // 2, 2).max(axis=-1)
    return x.reshape(x.shape[0], -1)


# ---------------------------------------------------------------------------
# Deterministic parameter init (synthetic weights, shapes from __init__)
# ---------------------------------------------------------------------------
def init_encoder_params(key, in_ch=1, hidden_dims=(2, 4), num_conv_blocks=2, K=3):
    params = []
    c_in = in_ch
    for h_dim in hidden_dims:
        block = []
        for _ in range(num_conv_blocks):
            key, kw, kb = jax.random.split(key, 3)
            w = jax.random.normal(kw, (h_dim, c_in, K), jnp.float32) * 0.3
            b = jax.random.normal(kb, (h_dim,), jnp.float32) * 0.1
            block.append((w, b))
            c_in = h_dim
        params.append(block)
    return params


# ---------------------------------------------------------------------------
if __name__ == "__main__":
    key = jax.random.PRNGKey(0)
    key, kx = jax.random.split(key)

    B, C_in, L = 2, 1, 16                      # L divisible by 2^2 (two pools)
    x = jax.random.normal(kx, (B, C_in, L), jnp.float32)

    params = init_encoder_params(key, in_ch=C_in, hidden_dims=(2, 4),
                                 num_conv_blocks=2, K=3)

    enc = jax.jit(encoder_forward)
    out = jax.block_until_ready(enc(x, params))

    ref = encoder_reference(x, params)
    assert out.shape == (B, 4 * (L // 4)), f"unexpected output shape {out.shape}"
    assert jnp.allclose(out, ref, atol=1e-5, rtol=1e-5), "Pallas result != reference"

    print("KERNEL_OK")
</pallas_src>

<mosaic_0001>
module attributes {stable_mosaic.version = 11 : i64} {
  func.func @kernel(%arg0: memref<90xf32, #tpu.memory_space<smem>>, %arg1: memref<12xf32, #tpu.memory_space<smem>>, %arg2: memref<2x1x16xf32, #tpu.memory_space<vmem>>, %arg3: memref<2x16xf32, #tpu.memory_space<vmem>>) attributes {dimension_semantics = [], scalar_prefetch = 0 : i64, scratch_operands = 0 : i64, tpu.core_type = #tpu.core_type<tc>} {
    %c0 = arith.constant 0 : index
    %c0_0 = arith.constant 0 : index
    %c0_1 = arith.constant 0 : index
    %0 = vector.load %arg2[%c0, %c0_0, %c0_1] : memref<2x1x16xf32, #tpu.memory_space<vmem>>, vector<2x1x16xf32>
    %1 = vector.shape_cast %0 : vector<2x1x16xf32> to vector<2x16xf32>
    %2 = vector.extract_strided_slice %1 {offsets = [0, 0], sizes = [2, 1], strides = [1, 1]} : vector<2x16xf32> to vector<2x1xf32>
    %cst = arith.constant 0.000000e+00 : f32
    %3 = vector.broadcast %cst : f32 to vector<2x1xf32>
    %4 = arith.mulf %2, %3 : vector<2x1xf32>
    %5 = vector.extract_strided_slice %1 {offsets = [0, 0], sizes = [2, 1], strides = [1, 1]} : vector<2x16xf32> to vector<2x1xf32>
    %cst_2 = arith.constant 0.000000e+00 : f32
    %6 = vector.broadcast %cst_2 : f32 to vector<2x1xf32>
    %7 = arith.mulf %5, %6 : vector<2x1xf32>
    %8 = tpu.concatenate %4, %1, %7 in 1 : vector<2x1xf32>, vector<2x16xf32>, vector<2x1xf32> -> vector<2x18xf32>
    %9 = vector.extract_strided_slice %8 {offsets = [0, 0], sizes = [2, 16], strides = [1, 1]} : vector<2x18xf32> to vector<2x16xf32>
    %10 = vector.extract_strided_slice %8 {offsets = [0, 1], sizes = [2, 16], strides = [1, 1]} : vector<2x18xf32> to vector<2x16xf32>
    %11 = vector.extract_strided_slice %8 {offsets = [0, 2], sizes = [2, 16], strides = [1, 1]} : vector<2x18xf32> to vector<2x16xf32>
    %c0_3 = arith.constant 0 : index
    %12 = memref.load %arg0[%c0_3] : memref<90xf32, #tpu.memory_space<smem>>
    %13 = vector.broadcast %12 : f32 to vector<2x16xf32>
    %14 = arith.mulf %9, %13 : vector<2x16xf32>
    %c0_4 = arith.constant 0 : index
    %15 = memref.load %arg1[%c0_4] : memref<12xf32, #tpu.memory_space<smem>>
    %16 = vector.broadcast %15 : f32 to vector<2x16xf32>
    %17 = arith.addf %14, %16 : vector<2x16xf32>
    %c1 = arith.constant 1 : index
    %18 = memref.load %arg0[%c1] : memref<90xf32, #tpu.memory_space<smem>>
    %19 = vector.broadcast %18 : f32 to vector<2x16xf32>
    %20 = arith.mulf %19, %10 : vector<2x16xf32>
    %21 = arith.addf %17, %20 : vector<2x16xf32>
    %c2 = arith.constant 2 : index
    %22 = memref.load %arg0[%c2] : memref<90xf32, #tpu.memory_space<smem>>
    %23 = vector.broadcast %22 : f32 to vector<2x16xf32>
    %24 = arith.mulf %23, %11 : vector<2x16xf32>
    %25 = arith.addf %21, %24 : vector<2x16xf32>
    %cst_5 = arith.constant 0.000000e+00 : f32
    %26 = vector.broadcast %cst_5 : f32 to vector<2x16xf32>
    %27 = arith.maximumf %25, %26 : vector<2x16xf32>
    %c3 = arith.constant 3 : index
    %28 = memref.load %arg0[%c3] : memref<90xf32, #tpu.memory_space<smem>>
    %29 = vector.broadcast %28 : f32 to vector<2x16xf32>
    %30 = arith.mulf %9, %29 : vector<2x16xf32>
    %c1_6 = arith.constant 1 : index
    %31 = memref.load %arg1[%c1_6] : memref<12xf32, #tpu.memory_space<smem>>
    %32 = vector.broadcast %31 : f32 to vector<2x16xf32>
    %33 = arith.addf %30, %32 : vector<2x16xf32>
    %c4 = arith.constant 4 : index
    %34 = memref.load %arg0[%c4] : memref<90xf32, #tpu.memory_space<smem>>
    %35 = vector.broadcast %34 : f32 to vector<2x16xf32>
    %36 = arith.mulf %35, %10 : vector<2x16xf32>
    %37 = arith.addf %33, %36 : vector<2x16xf32>
    %c5 = arith.constant 5 : index
    %38 = memref.load %arg0[%c5] : memref<90xf32, #tpu.memory_space<smem>>
    %39 = vector.broadcast %38 : f32 to vector<2x16xf32>
    %40 = arith.mulf %39, %11 : vector<2x16xf32>
    %41 = arith.addf %37, %40 : vector<2x16xf32>
    %cst_7 = arith.constant 0.000000e+00 : f32
    %42 = vector.broadcast %cst_7 : f32 to vector<2x16xf32>
    %43 = arith.maximumf %41, %42 : vector<2x16xf32>
    %44 = vector.extract_strided_slice %27 {offsets = [0, 0], sizes = [2, 1], strides = [1, 1]} : vector<2x16xf32> to vector<2x1xf32>
    %cst_8 = arith.constant 0.000000e+00 : f32
    %45 = vector.broadcast %cst_8 : f32 to vector<2x1xf32>
    %46 = arith.mulf %44, %45 : vector<2x1xf32>
    %47 = vector.extract_strided_slice %27 {offsets = [0, 0], sizes = [2, 1], strides = [1, 1]} : vector<2x16xf32> to vector<2x1xf32>
    %cst_9 = arith.constant 0.000000e+00 : f32
    %48 = vector.broadcast %cst_9 : f32 to vector<2x1xf32>
    %49 = arith.mulf %47, %48 : vector<2x1xf32>
    %50 = tpu.concatenate %46, %27, %49 in 1 : vector<2x1xf32>, vector<2x16xf32>, vector<2x1xf32> -> vector<2x18xf32>
    %51 = vector.extract_strided_slice %50 {offsets = [0, 0], sizes = [2, 16], strides = [1, 1]} : vector<2x18xf32> to vector<2x16xf32>
    %52 = vector.extract_strided_slice %50 {offsets = [0, 1], sizes = [2, 16], strides = [1, 1]} : vector<2x18xf32> to vector<2x16xf32>
    %53 = vector.extract_strided_slice %50 {offsets = [0, 2], sizes = [2, 16], strides = [1, 1]} : vector<2x18xf32> to vector<2x16xf32>
    %54 = tpu.concatenate %46, %43, %49 in 1 : vector<2x1xf32>, vector<2x16xf32>, vector<2x1xf32> -> vector<2x18xf32>
    %55 = vector.extract_strided_slice %54 {offsets = [0, 0], sizes = [2, 16], strides = [1, 1]} : vector<2x18xf32> to vector<2x16xf32>
    %56 = vector.extract_strided_slice %54 {offsets = [0, 1], sizes = [2, 16], strides = [1, 1]} : vector<2x18xf32> to vector<2x16xf32>
    %57 = vector.extract_strided_slice %54 {offsets = [0, 2], sizes = [2, 16], strides = [1, 1]} : vector<2x18xf32> to vector<2x16xf32>
    %c6 = arith.constant 6 : index
    %58 = memref.load %arg0[%c6] : memref<90xf32, #tpu.memory_space<smem>>
    %59 = vector.broadcast %58 : f32 to vector<2x16xf32>
    %60 = arith.mulf %51, %59 : vector<2x16xf32>
    %c2_10 = arith.constant 2 : index
    %61 = memref.load %arg1[%c2_10] : memref<12xf32, #tpu.memory_space<smem>>
    %62 = vector.broadcast %61 : f32 to vector<2x16xf32>
    %63 = arith.addf %60, %62 : vector<2x16xf32>
    %c7 = arith.constant 7 : index
    %64 = memref.load %arg0[%c7] : memref<90xf32, #tpu.memory_space<smem>>
    %65 = vector.broadcast %64 : f32 to vector<2x16xf32>
    %66 = arith.mulf %65, %52 : vector<2x16xf32>
    %67 = arith.addf %63, %66 : vector<2x16xf32>
    %c8 = arith.constant 8 : index
    %68 = memref.load %arg0[%c8] : memref<90xf32, #tpu.memory_space<smem>>
    %69 = vector.broadcast %68 : f32 to vector<2x16xf32>
    %70 = arith.mulf %69, %53 : vector<2x16xf32>
    %71 = arith.addf %67, %70 : vector<2x16xf32>
    %c9 = arith.constant 9 : index
    %72 = memref.load %arg0[%c9] : memref<90xf32, #tpu.memory_space<smem>>
    %73 = vector.broadcast %72 : f32 to vector<2x16xf32>
    %74 = arith.mulf %73, %55 : vector<2x16xf32>
    %75 = arith.addf %71, %74 : vector<2x16xf32>
    %c10 = arith.constant 10 : index
    %76 = memref.load %arg0[%c10] : memref<90xf32, #tpu.memory_space<smem>>
    %77 = vector.broadcast %76 : f32 to vector<2x16xf32>
    %78 = arith.mulf %77, %56 : vector<2x16xf32>
    %79 = arith.addf %75, %78 : vector<2x16xf32>
    %c11 = arith.constant 11 : index
    %80 = memref.load %arg0[%c11] : memref<90xf32, #tpu.memory_space<smem>>
    %81 = vector.broadcast %80 : f32 to vector<2x16xf32>
    %82 = arith.mulf %81, %57 : vector<2x16xf32>
    %83 = arith.addf %79, %82 : vector<2x16xf32>
    %cst_11 = arith.constant 0.000000e+00 : f32
    %84 = vector.broadcast %cst_11 : f32 to vector<2x16xf32>
    %85 = arith.maximumf %83, %84 : vector<2x16xf32>
    %c12 = arith.constant 12 : index
    %86 = memref.load %arg0[%c12] : memref<90xf32, #tpu.memory_space<smem>>
    %87 = vector.broadcast %86 : f32 to vector<2x16xf32>
    %88 = arith.mulf %51, %87 : vector<2x16xf32>
    %c3_12 = arith.constant 3 : index
    %89 = memref.load %arg1[%c3_12] : memref<12xf32, #tpu.memory_space<smem>>
    %90 = vector.broadcast %89 : f32 to vector<2x16xf32>
    %91 = arith.addf %88, %90 : vector<2x16xf32>
    %c13 = arith.constant 13 : index
    %92 = memref.load %arg0[%c13] : memref<90xf32, #tpu.memory_space<smem>>
    %93 = vector.broadcast %92 : f32 to vector<2x16xf32>
    %94 = arith.mulf %93, %52 : vector<2x16xf32>
    %95 = arith.addf %91, %94 : vector<2x16xf32>
    %c14 = arith.constant 14 : index
    %96 = memref.load %arg0[%c14] : memref<90xf32, #tpu.memory_space<smem>>
    %97 = vector.broadcast %96 : f32 to vector<2x16xf32>
    %98 = arith.mulf %97, %53 : vector<2x16xf32>
    %99 = arith.addf %95, %98 : vector<2x16xf32>
    %c15 = arith.constant 15 : index
    %100 = memref.load %arg0[%c15] : memref<90xf32, #tpu.memory_space<smem>>
    %101 = vector.broadcast %100 : f32 to vector<2x16xf32>
    %102 = arith.mulf %101, %55 : vector<2x16xf32>
    %103 = arith.addf %99, %102 : vector<2x16xf32>
    %c16 = arith.constant 16 : index
    %104 = memref.load %arg0[%c16] : memref<90xf32, #tpu.memory_space<smem>>
    %105 = vector.broadcast %104 : f32 to vector<2x16xf32>
    %106 = arith.mulf %105, %56 : vector<2x16xf32>
    %107 = arith.addf %103, %106 : vector<2x16xf32>
    %c17 = arith.constant 17 : index
    %108 = memref.load %arg0[%c17] : memref<90xf32, #tpu.memory_space<smem>>
    %109 = vector.broadcast %108 : f32 to vector<2x16xf32>
    %110 = arith.mulf %109, %57 : vector<2x16xf32>
    %111 = arith.addf %107, %110 : vector<2x16xf32>
    %cst_13 = arith.constant 0.000000e+00 : f32
    %112 = vector.broadcast %cst_13 : f32 to vector<2x16xf32>
    %113 = arith.maximumf %111, %112 : vector<2x16xf32>
    %114 = vector.extract_strided_slice %85 {offsets = [0, 1], sizes = [2, 15], strides = [1, 1]} : vector<2x16xf32> to vector<2x15xf32>
    %115 = vector.extract_strided_slice %85 {offsets = [0, 0], sizes = [2, 1], strides = [1, 1]} : vector<2x16xf32> to vector<2x1xf32>
    %cst_14 = arith.constant 0.000000e+00 : f32
    %116 = vector.broadcast %cst_14 : f32 to vector<2x1xf32>
    %117 = arith.mulf %115, %116 : vector<2x1xf32>
    %118 = tpu.concatenate %114, %117 in 1 : vector<2x15xf32>, vector<2x1xf32> -> vector<2x16xf32>
    %119 = arith.maximumf %85, %118 : vector<2x16xf32>
    %120 = vector.extract_strided_slice %119 {offsets = [0, 0], sizes = [2, 1], strides = [1, 1]} : vector<2x16xf32> to vector<2x1xf32>
    %121 = vector.extract_strided_slice %119 {offsets = [0, 2], sizes = [2, 1], strides = [1, 1]} : vector<2x16xf32> to vector<2x1xf32>
    %122 = vector.extract_strided_slice %119 {offsets = [0, 4], sizes = [2, 1], strides = [1, 1]} : vector<2x16xf32> to vector<2x1xf32>
    %123 = vector.extract_strided_slice %119 {offsets = [0, 6], sizes = [2, 1], strides = [1, 1]} : vector<2x16xf32> to vector<2x1xf32>
    %124 = vector.extract_strided_slice %119 {offsets = [0, 8], sizes = [2, 1], strides = [1, 1]} : vector<2x16xf32> to vector<2x1xf32>
    %125 = vector.extract_strided_slice %119 {offsets = [0, 10], sizes = [2, 1], strides = [1, 1]} : vector<2x16xf32> to vector<2x1xf32>
    %126 = vector.extract_strided_slice %119 {offsets = [0, 12], sizes = [2, 1], strides = [1, 1]} : vector<2x16xf32> to vector<2x1xf32>
    %127 = vector.extract_strided_slice %119 {offsets = [0, 14], sizes = [2, 1], strides = [1, 1]} : vector<2x16xf32> to vector<2x1xf32>
    %128 = tpu.concatenate %120, %121, %122, %123, %124, %125, %126, %127 in 1 : vector<2x1xf32>, vector<2x1xf32>, vector<2x1xf32>, vector<2x1xf32>, vector<2x1xf32>, vector<2x1xf32>, vector<2x1xf32>, vector<2x1xf32> -> vector<2x8xf32>
    %129 = vector.extract_strided_slice %113 {offsets = [0, 1], sizes = [2, 15], strides = [1, 1]} : vector<2x16xf32> to vector<2x15xf32>
    %130 = vector.extract_strided_slice %113 {offsets = [0, 0], sizes = [2, 1], strides = [1, 1]} : vector<2x16xf32> to vector<2x1xf32>
    %cst_15 = arith.constant 0.000000e+00 : f32
    %131 = vector.broadcast %cst_15 : f32 to vector<2x1xf32>
    %132 = arith.mulf %130, %131 : vector<2x1xf32>
    %133 = tpu.concatenate %129, %132 in 1 : vector<2x15xf32>, vector<2x1xf32> -> vector<2x16xf32>
    %134 = arith.maximumf %113, %133 : vector<2x16xf32>
    %135 = vector.extract_strided_slice %134 {offsets = [0, 0], sizes = [2, 1], strides = [1, 1]} : vector<2x16xf32> to vector<2x1xf32>
    %136 = vector.extract_strided_slice %134 {offsets = [0, 2], sizes = [2, 1], strides = [1, 1]} : vector<2x16xf32> to vector<2x1xf32>
    %137 = vector.extract_strided_slice %134 {offsets = [0, 4], sizes = [2, 1], strides = [1, 1]} : vector<2x16xf32> to vector<2x1xf32>
    %138 = vector.extract_strided_slice %134 {offsets = [0, 6], sizes = [2, 1], strides = [1, 1]} : vector<2x16xf32> to vector<2x1xf32>
    %139 = vector.extract_strided_slice %134 {offsets = [0, 8], sizes = [2, 1], strides = [1, 1]} : vector<2x16xf32> to vector<2x1xf32>
    %140 = vector.extract_strided_slice %134 {offsets = [0, 10], sizes = [2, 1], strides = [1, 1]} : vector<2x16xf32> to vector<2x1xf32>
    %141 = vector.extract_strided_slice %134 {offsets = [0, 12], sizes = [2, 1], strides = [1, 1]} : vector<2x16xf32> to vector<2x1xf32>
    %142 = vector.extract_strided_slice %134 {offsets = [0, 14], sizes = [2, 1], strides = [1, 1]} : vector<2x16xf32> to vector<2x1xf32>
    %143 = tpu.concatenate %135, %136, %137, %138, %139, %140, %141, %142 in 1 : vector<2x1xf32>, vector<2x1xf32>, vector<2x1xf32>, vector<2x1xf32>, vector<2x1xf32>, vector<2x1xf32>, vector<2x1xf32>, vector<2x1xf32> -> vector<2x8xf32>
    %144 = vector.extract_strided_slice %128 {offsets = [0, 0], sizes = [2, 1], strides = [1, 1]} : vector<2x8xf32> to vector<2x1xf32>
    %cst_16 = arith.constant 0.000000e+00 : f32
    %145 = vector.broadcast %cst_16 : f32 to vector<2x1xf32>
    %146 = arith.mulf %144, %145 : vector<2x1xf32>
    %147 = vector.extract_strided_slice %128 {offsets = [0, 0], sizes = [2, 1], strides = [1, 1]} : vector<2x8xf32> to vector<2x1xf32>
    %cst_17 = arith.constant 0.000000e+00 : f32
    %148 = vector.broadcast %cst_17 : f32 to vector<2x1xf32>
    %149 = arith.mulf %147, %148 : vector<2x1xf32>
    %150 = tpu.concatenate %146, %128, %149 in 1 : vector<2x1xf32>, vector<2x8xf32>, vector<2x1xf32> -> vector<2x10xf32>
    %151 = vector.extract_strided_slice %150 {offsets = [0, 0], sizes = [2, 8], strides = [1, 1]} : vector<2x10xf32> to vector<2x8xf32>
    %152 = vector.extract_strided_slice %150 {offsets = [0, 1], sizes = [2, 8], strides = [1, 1]} : vector<2x10xf32> to vector<2x8xf32>
    %153 = vector.extract_strided_slice %150 {offsets = [0, 2], sizes = [2, 8], strides = [1, 1]} : vector<2x10xf32> to vector<2x8xf32>
    %154 = tpu.concatenate %146, %143, %149 in 1 : vector<2x1xf32>, vector<2x8xf32>, vector<2x1xf32> -> vector<2x10xf32>
    %155 = vector.extract_strided_slice %154 {offsets = [0, 0], sizes = [2, 8], strides = [1, 1]} : vector<2x10xf32> to vector<2x8xf32>
    %156 = vector.extract_strided_slice %154 {offsets = [0, 1], sizes = [2, 8], strides = [1, 1]} : vector<2x10xf32> to vector<2x8xf32>
    %157 = vector.extract_strided_slice %154 {offsets = [0, 2], sizes = [2, 8], strides = [1, 1]} : vector<2x10xf32> to vector<2x8xf32>
    %c18 = arith.constant 18 : index
    %158 = memref.load %arg0[%c18] : memref<90xf32, #tpu.memory_space<smem>>
    %159 = vector.broadcast %158 : f32 to vector<2x8xf32>
    %160 = arith.mulf %151, %159 : vector<2x8xf32>
    %c4_18 = arith.constant 4 : index
    %161 = memref.load %arg1[%c4_18] : memref<12xf32, #tpu.memory_space<smem>>
    %162 = vector.broadcast %161 : f32 to vector<2x8xf32>
    %163 = arith.addf %160, %162 : vector<2x8xf32>
    %c19 = arith.constant 19 : index
    %164 = memref.load %arg0[%c19] : memref<90xf32, #tpu.memory_space<smem>>
    %165 = vector.broadcast %164 : f32 to vector<2x8xf32>
    %166 = arith.mulf %165, %152 : vector<2x8xf32>
    %167 = arith.addf %163, %166 : vector<2x8xf32>
    %c20 = arith.constant 20 : index
    %168 = memref.load %arg0[%c20] : memref<90xf32, #tpu.memory_space<smem>>
    %169 = vector.broadcast %168 : f32 to vector<2x8xf32>
    %170 = arith.mulf %169, %153 : vector<2x8xf32>
    %171 = arith.addf %167, %170 : vector<2x8xf32>
    %c21 = arith.constant 21 : index
    %172 = memref.load %arg0[%c21] : memref<90xf32, #tpu.memory_space<smem>>
    %173 = vector.broadcast %172 : f32 to vector<2x8xf32>
    %174 = arith.mulf %173, %155 : vector<2x8xf32>
    %175 = arith.addf %171, %174 : vector<2x8xf32>
    %c22 = arith.constant 22 : index
    %176 = memref.load %arg0[%c22] : memref<90xf32, #tpu.memory_space<smem>>
    %177 = vector.broadcast %176 : f32 to vector<2x8xf32>
    %178 = arith.mulf %177, %156 : vector<2x8xf32>
    %179 = arith.addf %175, %178 : vector<2x8xf32>
    %c23 = arith.constant 23 : index
    %180 = memref.load %arg0[%c23] : memref<90xf32, #tpu.memory_space<smem>>
    %181 = vector.broadcast %180 : f32 to vector<2x8xf32>
    %182 = arith.mulf %181, %157 : vector<2x8xf32>
    %183 = arith.addf %179, %182 : vector<2x8xf32>
    %cst_19 = arith.constant 0.000000e+00 : f32
    %184 = vector.broadcast %cst_19 : f32 to vector<2x8xf32>
    %185 = arith.maximumf %183, %184 : vector<2x8xf32>
    %c24 = arith.constant 24 : index
    %186 = memref.load %arg0[%c24] : memref<90xf32, #tpu.memory_space<smem>>
    %187 = vector.broadcast %186 : f32 to vector<2x8xf32>
    %188 = arith.mulf %151, %187 : vector<2x8xf32>
    %c5_20 = arith.constant 5 : index
    %189 = memref.load %arg1[%c5_20] : memref<12xf32, #tpu.memory_space<smem>>
    %190 = vector.broadcast %189 : f32 to vector<2x8xf32>
    %191 = arith.addf %188, %190 : vector<2x8xf32>
    %c25 = arith.constant 25 : index
    %192 = memref.load %arg0[%c25] : memref<90xf32, #tpu.memory_space<smem>>
    %193 = vector.broadcast %192 : f32 to vector<2x8xf32>
    %194 = arith.mulf %193, %152 : vector<2x8xf32>
    %195 = arith.addf %191, %194 : vector<2x8xf32>
    %c26 = arith.constant 26 : index
    %196 = memref.load %arg0[%c26] : memref<90xf32, #tpu.memory_space<smem>>
    %197 = vector.broadcast %196 : f32 to vector<2x8xf32>
    %198 = arith.mulf %197, %153 : vector<2x8xf32>
    %199 = arith.addf %195, %198 : vector<2x8xf32>
    %c27 = arith.constant 27 : index
    %200 = memref.load %arg0[%c27] : memref<90xf32, #tpu.memory_space<smem>>
    %201 = vector.broadcast %200 : f32 to vector<2x8xf32>
    %202 = arith.mulf %201, %155 : vector<2x8xf32>
    %203 = arith.addf %199, %202 : vector<2x8xf32>
    %c28 = arith.constant 28 : index
    %204 = memref.load %arg0[%c28] : memref<90xf32, #tpu.memory_space<smem>>
    %205 = vector.broadcast %204 : f32 to vector<2x8xf32>
    %206 = arith.mulf %205, %156 : vector<2x8xf32>
    %207 = arith.addf %203, %206 : vector<2x8xf32>
    %c29 = arith.constant 29 : index
    %208 = memref.load %arg0[%c29] : memref<90xf32, #tpu.memory_space<smem>>
    %209 = vector.broadcast %208 : f32 to vector<2x8xf32>
    %210 = arith.mulf %209, %157 : vector<2x8xf32>
    %211 = arith.addf %207, %210 : vector<2x8xf32>
    %cst_21 = arith.constant 0.000000e+00 : f32
    %212 = vector.broadcast %cst_21 : f32 to vector<2x8xf32>
    %213 = arith.maximumf %211, %212 : vector<2x8xf32>
    %c30 = arith.constant 30 : index
    %214 = memref.load %arg0[%c30] : memref<90xf32, #tpu.memory_space<smem>>
    %215 = vector.broadcast %214 : f32 to vector<2x8xf32>
    %216 = arith.mulf %151, %215 : vector<2x8xf32>
    %c6_22 = arith.constant 6 : index
    %217 = memref.load %arg1[%c6_22] : memref<12xf32, #tpu.memory_space<smem>>
    %218 = vector.broadcast %217 : f32 to vector<2x8xf32>
    %219 = arith.addf %216, %218 : vector<2x8xf32>
    %c31 = arith.constant 31 : index
    %220 = memref.load %arg0[%c31] : memref<90xf32, #tpu.memory_space<smem>>
    %221 = vector.broadcast %220 : f32 to vector<2x8xf32>
    %222 = arith.mulf %221, %152 : vector<2x8xf32>
    %223 = arith.addf %219, %222 : vector<2x8xf32>
    %c32 = arith.constant 32 : index
    %224 = memref.load %arg0[%c32] : memref<90xf32, #tpu.memory_space<smem>>
    %225 = vector.broadcast %224 : f32 to vector<2x8xf32>
    %226 = arith.mulf %225, %153 : vector<2x8xf32>
    %227 = arith.addf %223, %226 : vector<2x8xf32>
    %c33 = arith.constant 33 : index
    %228 = memref.load %arg0[%c33] : memref<90xf32, #tpu.memory_space<smem>>
    %229 = vector.broadcast %228 : f32 to vector<2x8xf32>
    %230 = arith.mulf %229, %155 : vector<2x8xf32>
    %231 = arith.addf %227, %230 : vector<2x8xf32>
    %c34 = arith.constant 34 : index
    %232 = memref.load %arg0[%c34] : memref<90xf32, #tpu.memory_space<smem>>
    %233 = vector.broadcast %232 : f32 to vector<2x8xf32>
    %234 = arith.mulf %233, %156 : vector<2x8xf32>
    %235 = arith.addf %231, %234 : vector<2x8xf32>
    %c35 = arith.constant 35 : index
    %236 = memref.load %arg0[%c35] : memref<90xf32, #tpu.memory_space<smem>>
    %237 = vector.broadcast %236 : f32 to vector<2x8xf32>
    %238 = arith.mulf %237, %157 : vector<2x8xf32>
    %239 = arith.addf %235, %238 : vector<2x8xf32>
    %cst_23 = arith.constant 0.000000e+00 : f32
    %240 = vector.broadcast %cst_23 : f32 to vector<2x8xf32>
    %241 = arith.maximumf %239, %240 : vector<2x8xf32>
    %c36 = arith.constant 36 : index
    %242 = memref.load %arg0[%c36] : memref<90xf32, #tpu.memory_space<smem>>
    %243 = vector.broadcast %242 : f32 to vector<2x8xf32>
    %244 = arith.mulf %151, %243 : vector<2x8xf32>
    %c7_24 = arith.constant 7 : index
    %245 = memref.load %arg1[%c7_24] : memref<12xf32, #tpu.memory_space<smem>>
    %246 = vector.broadcast %245 : f32 to vector<2x8xf32>
    %247 = arith.addf %244, %246 : vector<2x8xf32>
    %c37 = arith.constant 37 : index
    %248 = memref.load %arg0[%c37] : memref<90xf32, #tpu.memory_space<smem>>
    %249 = vector.broadcast %248 : f32 to vector<2x8xf32>
    %250 = arith.mulf %249, %152 : vector<2x8xf32>
    %251 = arith.addf %247, %250 : vector<2x8xf32>
    %c38 = arith.constant 38 : index
    %252 = memref.load %arg0[%c38] : memref<90xf32, #tpu.memory_space<smem>>
    %253 = vector.broadcast %252 : f32 to vector<2x8xf32>
    %254 = arith.mulf %253, %153 : vector<2x8xf32>
    %255 = arith.addf %251, %254 : vector<2x8xf32>
    %c39 = arith.constant 39 : index
    %256 = memref.load %arg0[%c39] : memref<90xf32, #tpu.memory_space<smem>>
    %257 = vector.broadcast %256 : f32 to vector<2x8xf32>
    %258 = arith.mulf %257, %155 : vector<2x8xf32>
    %259 = arith.addf %255, %258 : vector<2x8xf32>
    %c40 = arith.constant 40 : index
    %260 = memref.load %arg0[%c40] : memref<90xf32, #tpu.memory_space<smem>>
    %261 = vector.broadcast %260 : f32 to vector<2x8xf32>
    %262 = arith.mulf %261, %156 : vector<2x8xf32>
    %263 = arith.addf %259, %262 : vector<2x8xf32>
    %c41 = arith.constant 41 : index
    %264 = memref.load %arg0[%c41] : memref<90xf32, #tpu.memory_space<smem>>
    %265 = vector.broadcast %264 : f32 to vector<2x8xf32>
    %266 = arith.mulf %265, %157 : vector<2x8xf32>
    %267 = arith.addf %263, %266 : vector<2x8xf32>
    %cst_25 = arith.constant 0.000000e+00 : f32
    %268 = vector.broadcast %cst_25 : f32 to vector<2x8xf32>
    %269 = arith.maximumf %267, %268 : vector<2x8xf32>
    %270 = vector.extract_strided_slice %185 {offsets = [0, 0], sizes = [2, 1], strides = [1, 1]} : vector<2x8xf32> to vector<2x1xf32>
    %cst_26 = arith.constant 0.000000e+00 : f32
    %271 = vector.broadcast %cst_26 : f32 to vector<2x1xf32>
    %272 = arith.mulf %270, %271 : vector<2x1xf32>
    %273 = vector.extract_strided_slice %185 {offsets = [0, 0], sizes = [2, 1], strides = [1, 1]} : vector<2x8xf32> to vector<2x1xf32>
    %cst_27 = arith.constant 0.000000e+00 : f32
    %274 = vector.broadcast %cst_27 : f32 to vector<2x1xf32>
    %275 = arith.mulf %273, %274 : vector<2x1xf32>
    %276 = tpu.concatenate %272, %185, %275 in 1 : vector<2x1xf32>, vector<2x8xf32>, vector<2x1xf32> -> vector<2x10xf32>
    %277 = vector.extract_strided_slice %276 {offsets = [0, 0], sizes = [2, 8], strides = [1, 1]} : vector<2x10xf32> to vector<2x8xf32>
    %278 = vector.extract_strided_slice %276 {offsets = [0, 1], sizes = [2, 8], strides = [1, 1]} : vector<2x10xf32> to vector<2x8xf32>
    %279 = vector.extract_strided_slice %276 {offsets = [0, 2], sizes = [2, 8], strides = [1, 1]} : vector<2x10xf32> to vector<2x8xf32>
    %280 = tpu.concatenate %272, %213, %275 in 1 : vector<2x1xf32>, vector<2x8xf32>, vector<2x1xf32> -> vector<2x10xf32>
    %281 = vector.extract_strided_slice %280 {offsets = [0, 0], sizes = [2, 8], strides = [1, 1]} : vector<2x10xf32> to vector<2x8xf32>
    %282 = vector.extract_strided_slice %280 {offsets = [0, 1], sizes = [2, 8], strides = [1, 1]} : vector<2x10xf32> to vector<2x8xf32>
    %283 = vector.extract_strided_slice %280 {offsets = [0, 2], sizes = [2, 8], strides = [1, 1]} : vector<2x10xf32> to vector<2x8xf32>
    %284 = tpu.concatenate %272, %241, %275 in 1 : vector<2x1xf32>, vector<2x8xf32>, vector<2x1xf32> -> vector<2x10xf32>
    %285 = vector.extract_strided_slice %284 {offsets = [0, 0], sizes = [2, 8], strides = [1, 1]} : vector<2x10xf32> to vector<2x8xf32>
    %286 = vector.extract_strided_slice %284 {offsets = [0, 1], sizes = [2, 8], strides = [1, 1]} : vector<2x10xf32> to vector<2x8xf32>
    %287 = vector.extract_strided_slice %284 {offsets = [0, 2], sizes = [2, 8], strides = [1, 1]} : vector<2x10xf32> to vector<2x8xf32>
    %288 = tpu.concatenate %272, %269, %275 in 1 : vector<2x1xf32>, vector<2x8xf32>, vector<2x1xf32> -> vector<2x10xf32>
    %289 = vector.extract_strided_slice %288 {offsets = [0, 0], sizes = [2, 8], strides = [1, 1]} : vector<2x10xf32> to vector<2x8xf32>
    %290 = vector.extract_strided_slice %288 {offsets = [0, 1], sizes = [2, 8], strides = [1, 1]} : vector<2x10xf32> to vector<2x8xf32>
    %291 = vector.extract_strided_slice %288 {offsets = [0, 2], sizes = [2, 8], strides = [1, 1]} : vector<2x10xf32> to vector<2x8xf32>
    %c42 = arith.constant 42 : index
    %292 = memref.load %arg0[%c42] : memref<90xf32, #tpu.memory_space<smem>>
    %293 = vector.broadcast %292 : f32 to vector<2x8xf32>
    %294 = arith.mulf %277, %293 : vector<2x8xf32>
    %c8_28 = arith.constant 8 : index
    %295 = memref.load %arg1[%c8_28] : memref<12xf32, #tpu.memory_space<smem>>
    %296 = vector.broadcast %295 : f32 to vector<2x8xf32>
    %297 = arith.addf %294, %296 : vector<2x8xf32>
    %c43 = arith.constant 43 : index
    %298 = memref.load %arg0[%c43] : memref<90xf32, #tpu.memory_space<smem>>
    %299 = vector.broadcast %298 : f32 to vector<2x8xf32>
    %300 = arith.mulf %299, %278 : vector<2x8xf32>
    %301 = arith.addf %297, %300 : vector<2x8xf32>
    %c44 = arith.constant 44 : index
    %302 = memref.load %arg0[%c44] : memref<90xf32, #tpu.memory_space<smem>>
    %303 = vector.broadcast %302 : f32 to vector<2x8xf32>
    %304 = arith.mulf %303, %279 : vector<2x8xf32>
    %305 = arith.addf %301, %304 : vector<2x8xf32>
    %c45 = arith.constant 45 : index
    %306 = memref.load %arg0[%c45] : memref<90xf32, #tpu.memory_space<smem>>
    %307 = vector.broadcast %306 : f32 to vector<2x8xf32>
    %308 = arith.mulf %307, %281 : vector<2x8xf32>
    %309 = arith.addf %305, %308 : vector<2x8xf32>
    %c46 = arith.constant 46 : index
    %310 = memref.load %arg0[%c46] : memref<90xf32, #tpu.memory_space<smem>>
    %311 = vector.broadcast %310 : f32 to vector<2x8xf32>
    %312 = arith.mulf %311, %282 : vector<2x8xf32>
    %313 = arith.addf %309, %312 : vector<2x8xf32>
    %c47 = arith.constant 47 : index
    %314 = memref.load %arg0[%c47] : memref<90xf32, #tpu.memory_space<smem>>
    %315 = vector.broadcast %314 : f32 to vector<2x8xf32>
    %316 = arith.mulf %315, %283 : vector<2x8xf32>
    %317 = arith.addf %313, %316 : vector<2x8xf32>
    %c48 = arith.constant 48 : index
    %318 = memref.load %arg0[%c48] : memref<90xf32, #tpu.memory_space<smem>>
    %319 = vector.broadcast %318 : f32 to vector<2x8xf32>
    %320 = arith.mulf %319, %285 : vector<2x8xf32>
    %321 = arith.addf %317, %320 : vector<2x8xf32>
    %c49 = arith.constant 49 : index
    %322 = memref.load %arg0[%c49] : memref<90xf32, #tpu.memory_space<smem>>
    %323 = vector.broadcast %322 : f32 to vector<2x8xf32>
    %324 = arith.mulf %323, %286 : vector<2x8xf32>
    %325 = arith.addf %321, %324 : vector<2x8xf32>
    %c50 = arith.constant 50 : index
    %326 = memref.load %arg0[%c50] : memref<90xf32, #tpu.memory_space<smem>>
    %327 = vector.broadcast %326 : f32 to vector<2x8xf32>
    %328 = arith.mulf %327, %287 : vector<2x8xf32>
    %329 = arith.addf %325, %328 : vector<2x8xf32>
    %c51 = arith.constant 51 : index
    %330 = memref.load %arg0[%c51] : memref<90xf32, #tpu.memory_space<smem>>
    %331 = vector.broadcast %330 : f32 to vector<2x8xf32>
    %332 = arith.mulf %331, %289 : vector<2x8xf32>
    %333 = arith.addf %329, %332 : vector<2x8xf32>
    %c52 = arith.constant 52 : index
    %334 = memref.load %arg0[%c52] : memref<90xf32, #tpu.memory_space<smem>>
    %335 = vector.broadcast %334 : f32 to vector<2x8xf32>
    %336 = arith.mulf %335, %290 : vector<2x8xf32>
    %337 = arith.addf %333, %336 : vector<2x8xf32>
    %c53 = arith.constant 53 : index
    %338 = memref.load %arg0[%c53] : memref<90xf32, #tpu.memory_space<smem>>
    %339 = vector.broadcast %338 : f32 to vector<2x8xf32>
    %340 = arith.mulf %339, %291 : vector<2x8xf32>
    %341 = arith.addf %337, %340 : vector<2x8xf32>
    %cst_29 = arith.constant 0.000000e+00 : f32
    %342 = vector.broadcast %cst_29 : f32 to vector<2x8xf32>
    %343 = arith.maximumf %341, %342 : vector<2x8xf32>
    %c54 = arith.constant 54 : index
    %344 = memref.load %arg0[%c54] : memref<90xf32, #tpu.memory_space<smem>>
    %345 = vector.broadcast %344 : f32 to vector<2x8xf32>
    %346 = arith.mulf %277, %345 : vector<2x8xf32>
    %c9_30 = arith.constant 9 : index
    %347 = memref.load %arg1[%c9_30] : memref<12xf32, #tpu.memory_space<smem>>
    %348 = vector.broadcast %347 : f32 to vector<2x8xf32>
    %349 = arith.addf %346, %348 : vector<2x8xf32>
    %c55 = arith.constant 55 : index
    %350 = memref.load %arg0[%c55] : memref<90xf32, #tpu.memory_space<smem>>
    %351 = vector.broadcast %350 : f32 to vector<2x8xf32>
    %352 = arith.mulf %351, %278 : vector<2x8xf32>
    %353 = arith.addf %349, %352 : vector<2x8xf32>
    %c56 = arith.constant 56 : index
    %354 = memref.load %arg0[%c56] : memref<90xf32, #tpu.memory_space<smem>>
    %355 = vector.broadcast %354 : f32 to vector<2x8xf32>
    %356 = arith.mulf %355, %279 : vector<2x8xf32>
    %357 = arith.addf %353, %356 : vector<2x8xf32>
    %c57 = arith.constant 57 : index
    %358 = memref.load %arg0[%c57] : memref<90xf32, #tpu.memory_space<smem>>
    %359 = vector.broadcast %358 : f32 to vector<2x8xf32>
    %360 = arith.mulf %359, %281 : vector<2x8xf32>
    %361 = arith.addf %357, %360 : vector<2x8xf32>
    %c58 = arith.constant 58 : index
    %362 = memref.load %arg0[%c58] : memref<90xf32, #tpu.memory_space<smem>>
    %363 = vector.broadcast %362 : f32 to vector<2x8xf32>
    %364 = arith.mulf %363, %282 : vector<2x8xf32>
    %365 = arith.addf %361, %364 : vector<2x8xf32>
    %c59 = arith.constant 59 : index
    %366 = memref.load %arg0[%c59] : memref<90xf32, #tpu.memory_space<smem>>
    %367 = vector.broadcast %366 : f32 to vector<2x8xf32>
    %368 = arith.mulf %367, %283 : vector<2x8xf32>
    %369 = arith.addf %365, %368 : vector<2x8xf32>
    %c60 = arith.constant 60 : index
    %370 = memref.load %arg0[%c60] : memref<90xf32, #tpu.memory_space<smem>>
    %371 = vector.broadcast %370 : f32 to vector<2x8xf32>
    %372 = arith.mulf %371, %285 : vector<2x8xf32>
    %373 = arith.addf %369, %372 : vector<2x8xf32>
    %c61 = arith.constant 61 : index
    %374 = memref.load %arg0[%c61] : memref<90xf32, #tpu.memory_space<smem>>
    %375 = vector.broadcast %374 : f32 to vector<2x8xf32>
    %376 = arith.mulf %375, %286 : vector<2x8xf32>
    %377 = arith.addf %373, %376 : vector<2x8xf32>
    %c62 = arith.constant 62 : index
    %378 = memref.load %arg0[%c62] : memref<90xf32, #tpu.memory_space<smem>>
    %379 = vector.broadcast %378 : f32 to vector<2x8xf32>
    %380 = arith.mulf %379, %287 : vector<2x8xf32>
    %381 = arith.addf %377, %380 : vector<2x8xf32>
    %c63 = arith.constant 63 : index
    %382 = memref.load %arg0[%c63] : memref<90xf32, #tpu.memory_space<smem>>
    %383 = vector.broadcast %382 : f32 to vector<2x8xf32>
    %384 = arith.mulf %383, %289 : vector<2x8xf32>
    %385 = arith.addf %381, %384 : vector<2x8xf32>
    %c64 = arith.constant 64 : index
    %386 = memref.load %arg0[%c64] : memref<90xf32, #tpu.memory_space<smem>>
    %387 = vector.broadcast %386 : f32 to vector<2x8xf32>
    %388 = arith.mulf %387, %290 : vector<2x8xf32>
    %389 = arith.addf %385, %388 : vector<2x8xf32>
    %c65 = arith.constant 65 : index
    %390 = memref.load %arg0[%c65] : memref<90xf32, #tpu.memory_space<smem>>
    %391 = vector.broadcast %390 : f32 to vector<2x8xf32>
    %392 = arith.mulf %391, %291 : vector<2x8xf32>
    %393 = arith.addf %389, %392 : vector<2x8xf32>
    %cst_31 = arith.constant 0.000000e+00 : f32
    %394 = vector.broadcast %cst_31 : f32 to vector<2x8xf32>
    %395 = arith.maximumf %393, %394 : vector<2x8xf32>
    %c66 = arith.constant 66 : index
    %396 = memref.load %arg0[%c66] : memref<90xf32, #tpu.memory_space<smem>>
    %397 = vector.broadcast %396 : f32 to vector<2x8xf32>
    %398 = arith.mulf %277, %397 : vector<2x8xf32>
    %c10_32 = arith.constant 10 : index
    %399 = memref.load %arg1[%c10_32] : memref<12xf32, #tpu.memory_space<smem>>
    %400 = vector.broadcast %399 : f32 to vector<2x8xf32>
    %401 = arith.addf %398, %400 : vector<2x8xf32>
    %c67 = arith.constant 67 : index
    %402 = memref.load %arg0[%c67] : memref<90xf32, #tpu.memory_space<smem>>
    %403 = vector.broadcast %402 : f32 to vector<2x8xf32>
    %404 = arith.mulf %403, %278 : vector<2x8xf32>
    %405 = arith.addf %401, %404 : vector<2x8xf32>
    %c68 = arith.constant 68 : index
    %406 = memref.load %arg0[%c68] : memref<90xf32, #tpu.memory_space<smem>>
    %407 = vector.broadcast %406 : f32 to vector<2x8xf32>
    %408 = arith.mulf %407, %279 : vector<2x8xf32>
    %409 = arith.addf %405, %408 : vector<2x8xf32>
    %c69 = arith.constant 69 : index
    %410 = memref.load %arg0[%c69] : memref<90xf32, #tpu.memory_space<smem>>
    %411 = vector.broadcast %410 : f32 to vector<2x8xf32>
    %412 = arith.mulf %411, %281 : vector<2x8xf32>
    %413 = arith.addf %409, %412 : vector<2x8xf32>
    %c70 = arith.constant 70 : index
    %414 = memref.load %arg0[%c70] : memref<90xf32, #tpu.memory_space<smem>>
    %415 = vector.broadcast %414 : f32 to vector<2x8xf32>
    %416 = arith.mulf %415, %282 : vector<2x8xf32>
    %417 = arith.addf %413, %416 : vector<2x8xf32>
    %c71 = arith.constant 71 : index
    %418 = memref.load %arg0[%c71] : memref<90xf32, #tpu.memory_space<smem>>
    %419 = vector.broadcast %418 : f32 to vector<2x8xf32>
    %420 = arith.mulf %419, %283 : vector<2x8xf32>
    %421 = arith.addf %417, %420 : vector<2x8xf32>
    %c72 = arith.constant 72 : index
    %422 = memref.load %arg0[%c72] : memref<90xf32, #tpu.memory_space<smem>>
    %423 = vector.broadcast %422 : f32 to vector<2x8xf32>
    %424 = arith.mulf %423, %285 : vector<2x8xf32>
    %425 = arith.addf %421, %424 : vector<2x8xf32>
    %c73 = arith.constant 73 : index
    %426 = memref.load %arg0[%c73] : memref<90xf32, #tpu.memory_space<smem>>
    %427 = vector.broadcast %426 : f32 to vector<2x8xf32>
    %428 = arith.mulf %427, %286 : vector<2x8xf32>
    %429 = arith.addf %425, %428 : vector<2x8xf32>
    %c74 = arith.constant 74 : index
    %430 = memref.load %arg0[%c74] : memref<90xf32, #tpu.memory_space<smem>>
    %431 = vector.broadcast %430 : f32 to vector<2x8xf32>
    %432 = arith.mulf %431, %287 : vector<2x8xf32>
    %433 = arith.addf %429, %432 : vector<2x8xf32>
    %c75 = arith.constant 75 : index
    %434 = memref.load %arg0[%c75] : memref<90xf32, #tpu.memory_space<smem>>
    %435 = vector.broadcast %434 : f32 to vector<2x8xf32>
    %436 = arith.mulf %435, %289 : vector<2x8xf32>
    %437 = arith.addf %433, %436 : vector<2x8xf32>
    %c76 = arith.constant 76 : index
    %438 = memref.load %arg0[%c76] : memref<90xf32, #tpu.memory_space<smem>>
    %439 = vector.broadcast %438 : f32 to vector<2x8xf32>
    %440 = arith.mulf %439, %290 : vector<2x8xf32>
    %441 = arith.addf %437, %440 : vector<2x8xf32>
    %c77 = arith.constant 77 : index
    %442 = memref.load %arg0[%c77] : memref<90xf32, #tpu.memory_space<smem>>
    %443 = vector.broadcast %442 : f32 to vector<2x8xf32>
    %444 = arith.mulf %443, %291 : vector<2x8xf32>
    %445 = arith.addf %441, %444 : vector<2x8xf32>
    %cst_33 = arith.constant 0.000000e+00 : f32
    %446 = vector.broadcast %cst_33 : f32 to vector<2x8xf32>
    %447 = arith.maximumf %445, %446 : vector<2x8xf32>
    %c78 = arith.constant 78 : index
    %448 = memref.load %arg0[%c78] : memref<90xf32, #tpu.memory_space<smem>>
    %449 = vector.broadcast %448 : f32 to vector<2x8xf32>
    %450 = arith.mulf %277, %449 : vector<2x8xf32>
    %c11_34 = arith.constant 11 : index
    %451 = memref.load %arg1[%c11_34] : memref<12xf32, #tpu.memory_space<smem>>
    %452 = vector.broadcast %451 : f32 to vector<2x8xf32>
    %453 = arith.addf %450, %452 : vector<2x8xf32>
    %c79 = arith.constant 79 : index
    %454 = memref.load %arg0[%c79] : memref<90xf32, #tpu.memory_space<smem>>
    %455 = vector.broadcast %454 : f32 to vector<2x8xf32>
    %456 = arith.mulf %455, %278 : vector<2x8xf32>
    %457 = arith.addf %453, %456 : vector<2x8xf32>
    %c80 = arith.constant 80 : index
    %458 = memref.load %arg0[%c80] : memref<90xf32, #tpu.memory_space<smem>>
    %459 = vector.broadcast %458 : f32 to vector<2x8xf32>
    %460 = arith.mulf %459, %279 : vector<2x8xf32>
    %461 = arith.addf %457, %460 : vector<2x8xf32>
    %c81 = arith.constant 81 : index
    %462 = memref.load %arg0[%c81] : memref<90xf32, #tpu.memory_space<smem>>
    %463 = vector.broadcast %462 : f32 to vector<2x8xf32>
    %464 = arith.mulf %463, %281 : vector<2x8xf32>
    %465 = arith.addf %461, %464 : vector<2x8xf32>
    %c82 = arith.constant 82 : index
    %466 = memref.load %arg0[%c82] : memref<90xf32, #tpu.memory_space<smem>>
    %467 = vector.broadcast %466 : f32 to vector<2x8xf32>
    %468 = arith.mulf %467, %282 : vector<2x8xf32>
    %469 = arith.addf %465, %468 : vector<2x8xf32>
    %c83 = arith.constant 83 : index
    %470 = memref.load %arg0[%c83] : memref<90xf32, #tpu.memory_space<smem>>
    %471 = vector.broadcast %470 : f32 to vector<2x8xf32>
    %472 = arith.mulf %471, %283 : vector<2x8xf32>
    %473 = arith.addf %469, %472 : vector<2x8xf32>
    %c84 = arith.constant 84 : index
    %474 = memref.load %arg0[%c84] : memref<90xf32, #tpu.memory_space<smem>>
    %475 = vector.broadcast %474 : f32 to vector<2x8xf32>
    %476 = arith.mulf %475, %285 : vector<2x8xf32>
    %477 = arith.addf %473, %476 : vector<2x8xf32>
    %c85 = arith.constant 85 : index
    %478 = memref.load %arg0[%c85] : memref<90xf32, #tpu.memory_space<smem>>
    %479 = vector.broadcast %478 : f32 to vector<2x8xf32>
    %480 = arith.mulf %479, %286 : vector<2x8xf32>
    %481 = arith.addf %477, %480 : vector<2x8xf32>
    %c86 = arith.constant 86 : index
    %482 = memref.load %arg0[%c86] : memref<90xf32, #tpu.memory_space<smem>>
    %483 = vector.broadcast %482 : f32 to vector<2x8xf32>
    %484 = arith.mulf %483, %287 : vector<2x8xf32>
    %485 = arith.addf %481, %484 : vector<2x8xf32>
    %c87 = arith.constant 87 : index
    %486 = memref.load %arg0[%c87] : memref<90xf32, #tpu.memory_space<smem>>
    %487 = vector.broadcast %486 : f32 to vector<2x8xf32>
    %488 = arith.mulf %487, %289 : vector<2x8xf32>
    %489 = arith.addf %485, %488 : vector<2x8xf32>
    %c88 = arith.constant 88 : index
    %490 = memref.load %arg0[%c88] : memref<90xf32, #tpu.memory_space<smem>>
    %491 = vector.broadcast %490 : f32 to vector<2x8xf32>
    %492 = arith.mulf %491, %290 : vector<2x8xf32>
    %493 = arith.addf %489, %492 : vector<2x8xf32>
    %c89 = arith.constant 89 : index
    %494 = memref.load %arg0[%c89] : memref<90xf32, #tpu.memory_space<smem>>
    %495 = vector.broadcast %494 : f32 to vector<2x8xf32>
    %496 = arith.mulf %495, %291 : vector<2x8xf32>
    %497 = arith.addf %493, %496 : vector<2x8xf32>
    %cst_35 = arith.constant 0.000000e+00 : f32
    %498 = vector.broadcast %cst_35 : f32 to vector<2x8xf32>
    %499 = arith.maximumf %497, %498 : vector<2x8xf32>
    %500 = vector.extract_strided_slice %343 {offsets = [0, 1], sizes = [2, 7], strides = [1, 1]} : vector<2x8xf32> to vector<2x7xf32>
    %501 = vector.extract_strided_slice %343 {offsets = [0, 0], sizes = [2, 1], strides = [1, 1]} : vector<2x8xf32> to vector<2x1xf32>
    %cst_36 = arith.constant 0.000000e+00 : f32
    %502 = vector.broadcast %cst_36 : f32 to vector<2x1xf32>
    %503 = arith.mulf %501, %502 : vector<2x1xf32>
    %504 = tpu.concatenate %500, %503 in 1 : vector<2x7xf32>, vector<2x1xf32> -> vector<2x8xf32>
    %505 = arith.maximumf %343, %504 : vector<2x8xf32>
    %506 = vector.extract_strided_slice %505 {offsets = [0, 0], sizes = [2, 1], strides = [1, 1]} : vector<2x8xf32> to vector<2x1xf32>
    %507 = vector.extract_strided_slice %505 {offsets = [0, 2], sizes = [2, 1], strides = [1, 1]} : vector<2x8xf32> to vector<2x1xf32>
    %508 = vector.extract_strided_slice %505 {offsets = [0, 4], sizes = [2, 1], strides = [1, 1]} : vector<2x8xf32> to vector<2x1xf32>
    %509 = vector.extract_strided_slice %505 {offsets = [0, 6], sizes = [2, 1], strides = [1, 1]} : vector<2x8xf32> to vector<2x1xf32>
    %510 = tpu.concatenate %506, %507, %508, %509 in 1 : vector<2x1xf32>, vector<2x1xf32>, vector<2x1xf32>, vector<2x1xf32> -> vector<2x4xf32>
    %511 = vector.extract_strided_slice %395 {offsets = [0, 1], sizes = [2, 7], strides = [1, 1]} : vector<2x8xf32> to vector<2x7xf32>
    %512 = vector.extract_strided_slice %395 {offsets = [0, 0], sizes = [2, 1], strides = [1, 1]} : vector<2x8xf32> to vector<2x1xf32>
    %cst_37 = arith.constant 0.000000e+00 : f32
    %513 = vector.broadcast %cst_37 : f32 to vector<2x1xf32>
    %514 = arith.mulf %512, %513 : vector<2x1xf32>
    %515 = tpu.concatenate %511, %514 in 1 : vector<2x7xf32>, vector<2x1xf32> -> vector<2x8xf32>
    %516 = arith.maximumf %395, %515 : vector<2x8xf32>
    %517 = vector.extract_strided_slice %516 {offsets = [0, 0], sizes = [2, 1], strides = [1, 1]} : vector<2x8xf32> to vector<2x1xf32>
    %518 = vector.extract_strided_slice %516 {offsets = [0, 2], sizes = [2, 1], strides = [1, 1]} : vector<2x8xf32> to vector<2x1xf32>
    %519 = vector.extract_strided_slice %516 {offsets = [0, 4], sizes = [2, 1], strides = [1, 1]} : vector<2x8xf32> to vector<2x1xf32>
    %520 = vector.extract_strided_slice %516 {offsets = [0, 6], sizes = [2, 1], strides = [1, 1]} : vector<2x8xf32> to vector<2x1xf32>
    %521 = tpu.concatenate %517, %518, %519, %520 in 1 : vector<2x1xf32>, vector<2x1xf32>, vector<2x1xf32>, vector<2x1xf32> -> vector<2x4xf32>
    %522 = vector.extract_strided_slice %447 {offsets = [0, 1], sizes = [2, 7], strides = [1, 1]} : vector<2x8xf32> to vector<2x7xf32>
    %523 = vector.extract_strided_slice %447 {offsets = [0, 0], sizes = [2, 1], strides = [1, 1]} : vector<2x8xf32> to vector<2x1xf32>
    %cst_38 = arith.constant 0.000000e+00 : f32
    %524 = vector.broadcast %cst_38 : f32 to vector<2x1xf32>
    %525 = arith.mulf %523, %524 : vector<2x1xf32>
    %526 = tpu.concatenate %522, %525 in 1 : vector<2x7xf32>, vector<2x1xf32> -> vector<2x8xf32>
    %527 = arith.maximumf %447, %526 : vector<2x8xf32>
    %528 = vector.extract_strided_slice %527 {offsets = [0, 0], sizes = [2, 1], strides = [1, 1]} : vector<2x8xf32> to vector<2x1xf32>
    %529 = vector.extract_strided_slice %527 {offsets = [0, 2], sizes = [2, 1], strides = [1, 1]} : vector<2x8xf32> to vector<2x1xf32>
    %530 = vector.extract_strided_slice %527 {offsets = [0, 4], sizes = [2, 1], strides = [1, 1]} : vector<2x8xf32> to vector<2x1xf32>
    %531 = vector.extract_strided_slice %527 {offsets = [0, 6], sizes = [2, 1], strides = [1, 1]} : vector<2x8xf32> to vector<2x1xf32>
    %532 = tpu.concatenate %528, %529, %530, %531 in 1 : vector<2x1xf32>, vector<2x1xf32>, vector<2x1xf32>, vector<2x1xf32> -> vector<2x4xf32>
    %533 = vector.extract_strided_slice %499 {offsets = [0, 1], sizes = [2, 7], strides = [1, 1]} : vector<2x8xf32> to vector<2x7xf32>
    %534 = vector.extract_strided_slice %499 {offsets = [0, 0], sizes = [2, 1], strides = [1, 1]} : vector<2x8xf32> to vector<2x1xf32>
    %cst_39 = arith.constant 0.000000e+00 : f32
    %535 = vector.broadcast %cst_39 : f32 to vector<2x1xf32>
    %536 = arith.mulf %534, %535 : vector<2x1xf32>
    %537 = tpu.concatenate %533, %536 in 1 : vector<2x7xf32>, vector<2x1xf32> -> vector<2x8xf32>
    %538 = arith.maximumf %499, %537 : vector<2x8xf32>
    %539 = vector.extract_strided_slice %538 {offsets = [0, 0], sizes = [2, 1], strides = [1, 1]} : vector<2x8xf32> to vector<2x1xf32>
    %540 = vector.extract_strided_slice %538 {offsets = [0, 2], sizes = [2, 1], strides = [1, 1]} : vector<2x8xf32> to vector<2x1xf32>
    %541 = vector.extract_strided_slice %538 {offsets = [0, 4], sizes = [2, 1], strides = [1, 1]} : vector<2x8xf32> to vector<2x1xf32>
    %542 = vector.extract_strided_slice %538 {offsets = [0, 6], sizes = [2, 1], strides = [1, 1]} : vector<2x8xf32> to vector<2x1xf32>
    %543 = tpu.concatenate %539, %540, %541, %542 in 1 : vector<2x1xf32>, vector<2x1xf32>, vector<2x1xf32>, vector<2x1xf32> -> vector<2x4xf32>
    %544 = tpu.concatenate %510, %521, %532, %543 in 1 : vector<2x4xf32>, vector<2x4xf32>, vector<2x4xf32>, vector<2x4xf32> -> vector<2x16xf32>
    %c0_40 = arith.constant 0 : index
    %c0_41 = arith.constant 0 : index
    %545 = vector.load %arg3[%c0_40, %c0_41] : memref<2x16xf32, #tpu.memory_space<vmem>>, vector<2x16xf32>
    tpu.vector_store %arg3[%c0_40, %c0_41], %544 {strides = array<i32>} : memref<2x16xf32, #tpu.memory_space<vmem>>, vector<2x16xf32>,
    return
  }
}

</mosaic_0001>

<llo_original>
// kernel: encoder_forward.1
$region0: #{encoder_forward.1}
  #allocation0 [shape = 'u32[]', space=smem, size = 0x4, offset = 0x4, fixed_abs, tag = 'smem constant byte address 0x4 - core index']
  #allocation1 [shape = 'u32[72,128]{1,0:T(1,128)}', space=vmem, size = 0x9000, scoped, tag = 'internal scratch']
  %s0 = inlined_call_operand.vmem [shape: f32[90], index: 0, kind: input, shape index: {}]
  %s1 = inlined_call_operand.vmem [shape: f32[12], index: 1, kind: input, shape index: {}]
  %s2 = inlined_call_operand.vmem [shape: f32[2,1,16], index: 2, kind: input, shape index: {}]
  %s3 = inlined_call_operand.hbm [shape: f32[2,16], index: 3, kind: output, shape index: {}]
  %s4 = sld [smem:[#allocation0]]
  $region30: #{encoder_forward.1} parent=0
    _
  %s6 = ssub.s32 1, %s4
  %s7 = scalar_select 0, %s6, %s4
  $region1: #{encoder_forward.1} parent=0
    #allocation2 [shape = 'u8[512]{0}', space=smem, size = 0x200, scoped, tag = 'input window, operand 0, single buffered']
    #allocation3 [shape = 's32[1]{0}', space=sflag, size = 0x4, scoped, tag = 'scoped memory for encoder_forward.1']
    #allocation4 [shape = 's32[1]{0}', space=sflag, size = 0x4, scoped, tag = 'scoped memory for encoder_forward.1']
    #allocation5 [shape = 'u8[512]{0}', space=smem, size = 0x200, scoped, tag = 'input window, operand 1, single buffered']
    #allocation6 [shape = 's32[1]{0}', space=sflag, size = 0x4, scoped, tag = 'scoped memory for encoder_forward.1']
    #allocation7 [shape = 'u8[1024]{0}', space=vmem, size = 0x400, scoped, tag = 'output window, operand 0, single buffered']
    %8 = vsyncpa [#allocation4], 0
    %9 = vsyncpa [#allocation6], 0
    %10 = vsyncpa [#allocation3], 0
    // Predicated region
    $region2: #{encoder_forward.1} parent=1 // pred_check
      _
    $region3: #{encoder_forward.1} parent=1 // pred_check_branch
      %12 = sbr.rel (0) target = $region5
    $region4: #{encoder_forward.1} parent=1 // pred_region
      %14 = vsyncadd [#allocation4], 0
      %s16 = sshll.u32 %s0, 4
      %s17 = int_to_ptr.vmem [resolvable:$true] %s16
      %19 = dma.vmem_to_smem %s17, 16, [#allocation2], [#allocation4]
    $region5: #{encoder_forward.1} parent=1 // pred_fallthru
      _
    // Predicated region
    $region6: #{encoder_forward.1} parent=1 // pred_check
      _
    $region7: #{encoder_forward.1} parent=1 // pred_check_branch
      %21 = sbr.rel (0) target = $region9
    $region8: #{encoder_forward.1} parent=1 // pred_region
      %23 = vsyncadd [#allocation6], 0
      %s25 = sshll.u32 %s1, 4
      %s26 = int_to_ptr.vmem [resolvable:$true] %s25
      %28 = dma.vmem_to_smem %s26, 16, [#allocation5], [#allocation6]
    $region9: #{encoder_forward.1} parent=1 // pred_fallthru
      _
    // Predicated region
    $region10: #{encoder_forward.1} parent=1 // pred_check
      _
    $region11: #{encoder_forward.1} parent=1 // pred_check_branch
      %30 = sbr.rel (0) target = $region13
    $region12: #{encoder_forward.1} parent=1 // pred_region
      _
    $region13: #{encoder_forward.1} parent=1 // pred_fallthru
      _
    // Predicated region
    $region14: #{encoder_forward.1} parent=1 // pred_check
      _
    $region15: #{encoder_forward.1} parent=1 // pred_check_branch
      %32 = sbr.rel (0) target = $region17
    $region16: #{encoder_forward.1} parent=1 // pred_region
      %34 = dma.done [#allocation4], 16
    $region17: #{encoder_forward.1} parent=1 // pred_fallthru
      _
    // Predicated region
    $region18: #{encoder_forward.1} parent=1 // pred_check
      _
    $region19: #{encoder_forward.1} parent=1 // pred_check_branch
      %36 = sbr.rel (0) target = $region21
    $region20: #{encoder_forward.1} parent=1 // pred_region
      %38 = dma.done [#allocation6], 16
    $region21: #{encoder_forward.1} parent=1 // pred_fallthru
      _
    %39 = sfence
    %v40 = vld [vmem:[%s2] sm:$0x1]
    %v41 = vld [vmem:[%s2 + $0x1] sm:$0x1]
    %v42 = vmul.f32 %v40, 0.0
    %v43 = vmul.f32 %v41, 0.0
    %46 = vst [vmem:[#allocation1] ss:$9 sm:$0xff] %v42
    %s47 = scalar_lea.vmem [#allocation1], 1
    %48 = vst [vmem:[%s47] ss:$9 sm:$0xff] %v43
    %v49 = vld [vmem:[#allocation1] sm:$0xff]
    %53 = vst [vmem:[#allocation1] ss:$9 sm:$0xff] %v40
    %s54 = scalar_lea.vmem [#allocation1], 1
    %55 = vst [vmem:[%s54] ss:$9 sm:$0xff] %v41
    %v56 = vld [vmem:[#allocation1] sm:$0xff]
    %57 = vrot.lane.b32.xlu0 %v56, 1
    %v58 = vpop.permute.xlu0 %57
    %60 = vst [vmem:[#allocation1] ss:$9 sm:$0xff] %v42
    %s61 = scalar_lea.vmem [#allocation1], 1
    %62 = vst [vmem:[%s61] ss:$9 sm:$0xff] %v43
    %v63 = vld [vmem:[#allocation1] sm:$0xff]
    %64 = vrot.lane.b32.xlu0 %v63, 17
    %v65 = vpop.permute.xlu0 %64
    %vm67 = vcmask 7168
    %v68 = vsel %vm67, %v49, %v58
    %vm69 = vcmask 138240
    %v70 = vsel %vm69, %v68, %v65
    %s71 = sld [smem:[#allocation2]]
    %v72 = vstv %s71
    %v73 = vmul.f32 %v70, %v72
    %s74 = sld [smem:[#allocation5]]
    %v75 = vstv %s74
    %v76 = vadd.f32 %v73, %v75
    %s77 = sld [smem:[#allocation2 + $0x1]]
    %v78 = vstv %s77
    %v79 = vmul.f32 %v78, %v70
    %81 = vrot.lane.b32.xlu0 %v79, 127
    %v82 = vpop.permute.xlu0 %81
    %v84 = vadd.f32 %v76, %v82
    %s85 = sld [smem:[#allocation2 + $0x2]]
    %v86 = vstv %s85
    %v87 = vmul.f32 %v86, %v70
    %89 = vrot.lane.b32.xlu0 %v87, 126
    %v90 = vpop.permute.xlu0 %89
    %v92 = vadd.f32 %v84, %v90
    %v93 = vmax.f32 %v92, 0.0
    %s94 = sld [smem:[#allocation2 + $0x3]]
    %v95 = vstv %s94
    %v96 = vmul.f32 %v70, %v95
    %s97 = sld [smem:[#allocation5 + $0x1]]
    %v98 = vstv %s97
    %v99 = vadd.f32 %v96, %v98
    %s100 = sld [smem:[#allocation2 + $0x4]]
    %v101 = vstv %s100
    %v102 = vmul.f32 %v101, %v70
    %104 = vrot.lane.b32.xlu0 %v102, 127
    %v105 = vpop.permute.xlu0 %104
    %v107 = vadd.f32 %v99, %v105
    %s108 = sld [smem:[#allocation2 + $0x5]]
    %v109 = vstv %s108
    %v110 = vmul.f32 %v109, %v70
    %112 = vrot.lane.b32.xlu0 %v110, 126
    %v113 = vpop.permute.xlu0 %112
    %v115 = vadd.f32 %v107, %v113
    %v116 = vmax.f32 %v115, 0.0
    %v117 = vmul.f32 %v93, 0.0
    %119 = vrot.lane.b32.xlu0 %v93, 1
    %v120 = vpop.permute.xlu0 %119
    %123 = vrot.lane.b32.xlu0 %v117, 17
    %v124 = vpop.permute.xlu0 %123
    %v126 = vsel %vm67, %v117, %v120
    %v127 = vsel %vm69, %v126, %v124
    %129 = vrot.lane.b32.xlu0 %v116, 1
    %v130 = vpop.permute.xlu0 %129
    %v132 = vsel %vm67, %v117, %v130
    %v133 = vsel %vm69, %v132, %v124
    %s134 = sld [smem:[#allocation2 + $0x6]]
    %v135 = vstv %s134
    %v136 = vmul.f32 %v127, %v135
    %s137 = sld [smem:[#allocation5 + $0x2]]
    %v138 = vstv %s137
    %v139 = vadd.f32 %v136, %v138
    %s140 = sld [smem:[#allocation2 + $0x7]]
    %v141 = vstv %s140
    %v142 = vmul.f32 %v141, %v127
    %144 = vrot.lane.b32.xlu0 %v142, 127
    %v145 = vpop.permute.xlu0 %144
    %v147 = vadd.f32 %v139, %v145
    %s148 = sld [smem:[#allocation2 + $0x8]]
    %v149 = vstv %s148
    %v150 = vmul.f32 %v149, %v127
    %152 = vrot.lane.b32.xlu0 %v150, 126
    %v153 = vpop.permute.xlu0 %152
    %v155 = vadd.f32 %v147, %v153
    %s156 = sld [smem:[#allocation2 + $0x9]]
    %v157 = vstv %s156
    %v158 = vmul.f32 %v157, %v133
    %v159 = vadd.f32 %v155, %v158
    %s160 = sld [smem:[#allocation2 + $0xa]]
    %v161 = vstv %s160
    %v162 = vmul.f32 %v161, %v133
    %164 = vrot.lane.b32.xlu0 %v162, 127
    %v165 = vpop.permute.xlu0 %164
    %v167 = vadd.f32 %v159, %v165
    %s168 = sld [smem:[#allocation2 + $0xb]]
    %v169 = vstv %s168
    %v170 = vmul.f32 %v169, %v133
    %172 = vrot.lane.b32.xlu0 %v170, 126
    %v173 = vpop.permute.xlu0 %172
    %v175 = vadd.f32 %v167, %v173
    %v176 = vmax.f32 %v175, 0.0
    %s177 = sld [smem:[#allocation2 + $0xc]]
    %v178 = vstv %s177
    %v179 = vmul.f32 %v127, %v178
    %s180 = sld [smem:[#allocation5 + $0x3]]
    %v181 = vstv %s180
    %v182 = vadd.f32 %v179, %v181
    %s183 = sld [smem:[#allocation2 + $0xd]]
    %v184 = vstv %s183
    %v185 = vmul.f32 %v184, %v127
    %187 = vrot.lane.b32.xlu0 %v185, 127
    %v188 = vpop.permute.xlu0 %187
    %v190 = vadd.f32 %v182, %v188
    %s191 = sld [smem:[#allocation2 + $0xe]]
    %v192 = vstv %s191
    %v193 = vmul.f32 %v192, %v127
    %195 = vrot.lane.b32.xlu0 %v193, 126
    %v196 = vpop.permute.xlu0 %195
    %v198 = vadd.f32 %v190, %v196
    %s199 = sld [smem:[#allocation2 + $0xf]]
    %v200 = vstv %s199
    %v201 = vmul.f32 %v200, %v133
    %v202 = vadd.f32 %v198, %v201
    %s203 = sld [smem:[#allocation2 + $0x10]]
    %v204 = vstv %s203
    %v205 = vmul.f32 %v204, %v133
    %207 = vrot.lane.b32.xlu0 %v205, 127
    %v208 = vpop.permute.xlu0 %207
    %v210 = vadd.f32 %v202, %v208
    %s211 = sld [smem:[#allocation2 + $0x11]]
    %v212 = vstv %s211
    %v213 = vmul.f32 %v212, %v133
    %215 = vrot.lane.b32.xlu0 %v213, 126
    %v216 = vpop.permute.xlu0 %215
    %v218 = vadd.f32 %v210, %v216
    %v219 = vmax.f32 %v218, 0.0
    %v220 = vmul.f32 %v176, 0.0
    %222 = vrot.lane.b32.xlu0 %v176, 127
    %v223 = vpop.permute.xlu0 %222
    %226 = vrot.lane.b32.xlu0 %v220, 15
    %v227 = vpop.permute.xlu0 %226
    %vm229 = vcmask 121856
    %v230 = vsel %vm229, %v223, %v227
    %v231 = vmax.f32 %v176, %v230
    %233 = vrot.lane.b32.xlu0 %v231, 127
    %v234 = vpop.permute.xlu0 %233
    %236 = vrot.lane.b32.xlu0 %v231, 126
    %v237 = vpop.permute.xlu0 %236
    %239 = vrot.lane.b32.xlu0 %v231, 125
    %v240 = vpop.permute.xlu0 %239
    %242 = vrot.lane.b32.xlu0 %v231, 124
    %v243 = vpop.permute.xlu0 %242
    %245 = vrot.lane.b32.xlu0 %v231, 123
    %v246 = vpop.permute.xlu0 %245
    %248 = vrot.lane.b32.xlu0 %v231, 122
    %v249 = vpop.permute.xlu0 %248
    %251 = vrot.lane.b32.xlu0 %v231, 121
    %v252 = vpop.permute.xlu0 %251
    %v254 = vsel %vm67, %v231, %v234
    %vm255 = vcmask 15360
    %v256 = vsel %vm255, %v254, %v237
    %vm257 = vcmask 23552
    %v258 = vsel %vm257, %v256, %v240
    %vm259 = vcmask 31744
    %v260 = vsel %vm259, %v258, %v243
    %vm261 = vcmask 39936
    %v262 = vsel %vm261, %v260, %v246
    %vm263 = vcmask 48128
    %v264 = vsel %vm263, %v262, %v249
    %vm265 = vcmask 56320
    %v266 = vsel %vm265, %v264, %v252
    %v267 = vmul.f32 %v219, 0.0
    %269 = vrot.lane.b32.xlu0 %v219, 127
    %v270 = vpop.permute.xlu0 %269
    %273 = vrot.lane.b32.xlu0 %v267, 15
    %v274 = vpop.permute.xlu0 %273
    %v276 = vsel %vm229, %v270, %v274
    %v277 = vmax.f32 %v219, %v276
    %279 = vrot.lane.b32.xlu0 %v277, 127
    %v280 = vpop.permute.xlu0 %279
    %282 = vrot.lane.b32.xlu0 %v277, 126
    %v283 = vpop.permute.xlu0 %282
    %285 = vrot.lane.b32.xlu0 %v277, 125
    %v286 = vpop.permute.xlu0 %285
    %288 = vrot.lane.b32.xlu0 %v277, 124
    %v289 = vpop.permute.xlu0 %288
    %291 = vrot.lane.b32.xlu0 %v277, 123
    %v292 = vpop.permute.xlu0 %291
    %294 = vrot.lane.b32.xlu0 %v277, 122
    %v295 = vpop.permute.xlu0 %294
    %297 = vrot.lane.b32.xlu0 %v277, 121
    %v298 = vpop.permute.xlu0 %297
    %v300 = vsel %vm67, %v277, %v280
    %v301 = vsel %vm255, %v300, %v283
    %v302 = vsel %vm257, %v301, %v286
    %v303 = vsel %vm259, %v302, %v289
    %v304 = vsel %vm261, %v303, %v292
    %v305 = vsel %vm263, %v304, %v295
    %v306 = vsel %vm265, %v305, %v298
    %v307 = vmul.f32 %v266, 0.0
    %309 = vrot.lane.b32.xlu0 %v266, 1
    %v310 = vpop.permute.xlu0 %309
    %313 = vrot.lane.b32.xlu0 %v307, 9
    %v314 = vpop.permute.xlu0 %313
    %v316 = vsel %vm67, %v307, %v310
    %vm317 = vcmask 72704
    %v318 = vsel %vm317, %v316, %v314
    %320 = vrot.lane.b32.xlu0 %v306, 1
    %v321 = vpop.permute.xlu0 %320
    %v323 = vsel %vm67, %v307, %v321
    %v324 = vsel %vm317, %v323, %v314
    %s325 = sld [smem:[#allocation2 + $0x12]]
    %v326 = vstv %s325
    %v327 = vmul.f32 %v318, %v326
    %s328 = sld [smem:[#allocation5 + $0x4]]
    %v329 = vstv %s328
    %v330 = vadd.f32 %v327, %v329
    %s331 = sld [smem:[#allocation2 + $0x13]]
    %v332 = vstv %s331
    %v333 = vmul.f32 %v332, %v318
    %335 = vrot.lane.b32.xlu0 %v333, 127
    %v336 = vpop.permute.xlu0 %335
    %v338 = vadd.f32 %v330, %v336
    %s339 = sld [smem:[#allocation2 + $0x14]]
    %v340 = vstv %s339
    %v341 = vmul.f32 %v340, %v318
    %343 = vrot.lane.b32.xlu0 %v341, 126
    %v344 = vpop.permute.xlu0 %343
    %v346 = vadd.f32 %v338, %v344
    %s347 = sld [smem:[#allocation2 + $0x15]]
    %v348 = vstv %s347
    %v349 = vmul.f32 %v348, %v324
    %v350 = vadd.f32 %v346, %v349
    %s351 = sld [smem:[#allocation2 + $0x16]]
    %v352 = vstv %s351
    %v353 = vmul.f32 %v352, %v324
    %355 = vrot.lane.b32.xlu0 %v353, 127
    %v356 = vpop.permute.xlu0 %355
    %v358 = vadd.f32 %v350, %v356
    %s359 = sld [smem:[#allocation2 + $0x17]]
    %v360 = vstv %s359
    %v361 = vmul.f32 %v360, %v324
    %363 = vrot.lane.b32.xlu0 %v361, 126
    %v364 = vpop.permute.xlu0 %363
    %v366 = vadd.f32 %v358, %v364
    %v367 = vmax.f32 %v366, 0.0
    %s368 = sld [smem:[#allocation2 + $0x18]]
    %v369 = vstv %s368
    %v370 = vmul.f32 %v318, %v369
    %s371 = sld [smem:[#allocation5 + $0x5]]
    %v372 = vstv %s371
    %v373 = vadd.f32 %v370, %v372
    %s374 = sld [smem:[#allocation2 + $0x19]]
    %v375 = vstv %s374
    %v376 = vmul.f32 %v375, %v318
    %378 = vrot.lane.b32.xlu0 %v376, 127
    %v379 = vpop.permute.xlu0 %378
    %v381 = vadd.f32 %v373, %v379
    %s382 = sld [smem:[#allocation2 + $0x1a]]
    %v383 = vstv %s382
    %v384 = vmul.f32 %v383, %v318
    %386 = vrot.lane.b32.xlu0 %v384, 126
    %v387 = vpop.permute.xlu0 %386
    %v389 = vadd.f32 %v381, %v387
    %s390 = sld [smem:[#allocation2 + $0x1b]]
    %v391 = vstv %s390
    %v392 = vmul.f32 %v391, %v324
    %v393 = vadd.f32 %v389, %v392
    %s394 = sld [smem:[#allocation2 + $0x1c]]
    %v395 = vstv %s394
    %v396 = vmul.f32 %v395, %v324
    %398 = vrot.lane.b32.xlu0 %v396, 127
    %v399 = vpop.permute.xlu0 %398
    %v401 = vadd.f32 %v393, %v399
    %s402 = sld [smem:[#allocation2 + $0x1d]]
    %v403 = vstv %s402
    %v404 = vmul.f32 %v403, %v324
    %406 = vrot.lane.b32.xlu0 %v404, 126
    %v407 = vpop.permute.xlu0 %406
    %v409 = vadd.f32 %v401, %v407
    %v410 = vmax.f32 %v409, 0.0
    %s411 = sld [smem:[#allocation2 + $0x1e]]
    %v412 = vstv %s411
    %v413 = vmul.f32 %v318, %v412
    %s414 = sld [smem:[#allocation5 + $0x6]]
    %v415 = vstv %s414
    %v416 = vadd.f32 %v413, %v415
    %s417 = sld [smem:[#allocation2 + $0x1f]]
    %v418 = vstv %s417
    %v419 = vmul.f32 %v418, %v318
    %421 = vrot.lane.b32.xlu0 %v419, 127
    %v422 = vpop.permute.xlu0 %421
    %v424 = vadd.f32 %v416, %v422
    %s425 = sld [smem:[#allocation2 + $0x20]]
    %v426 = vstv %s425
    %v427 = vmul.f32 %v426, %v318
    %429 = vrot.lane.b32.xlu0 %v427, 126
    %v430 = vpop.permute.xlu0 %429
    %v432 = vadd.f32 %v424, %v430
    %s433 = sld [smem:[#allocation2 + $0x21]]
    %v434 = vstv %s433
    %v435 = vmul.f32 %v434, %v324
    %v436 = vadd.f32 %v432, %v435
    %s437 = sld [smem:[#allocation2 + $0x22]]
    %v438 = vstv %s437
    %v439 = vmul.f32 %v438, %v324
    %441 = vrot.lane.b32.xlu0 %v439, 127
    %v442 = vpop.permute.xlu0 %441
    %v444 = vadd.f32 %v436, %v442
    %s445 = sld [smem:[#allocation2 + $0x23]]
    %v446 = vstv %s445
    %v447 = vmul.f32 %v446, %v324
    %449 = vrot.lane.b32.xlu0 %v447, 126
    %v450 = vpop.permute.xlu0 %449
    %v452 = vadd.f32 %v444, %v450
    %v453 = vmax.f32 %v452, 0.0
    %s454 = sld [smem:[#allocation2 + $0x24]]
    %v455 = vstv %s454
    %v456 = vmul.f32 %v318, %v455
    %s457 = sld [smem:[#allocation5 + $0x7]]
    %v458 = vstv %s457
    %v459 = vadd.f32 %v456, %v458
    %s460 = sld [smem:[#allocation2 + $0x25]]
    %v461 = vstv %s460
    %v462 = vmul.f32 %v461, %v318
    %464 = vrot.lane.b32.xlu0 %v462, 127
    %v465 = vpop.permute.xlu0 %464
    %v467 = vadd.f32 %v459, %v465
    %s468 = sld [smem:[#allocation2 + $0x26]]
    %v469 = vstv %s468
    %v470 = vmul.f32 %v469, %v318
    %472 = vrot.lane.b32.xlu0 %v470, 126
    %v473 = vpop.permute.xlu0 %472
    %v475 = vadd.f32 %v467, %v473
    %s476 = sld [smem:[#allocation2 + $0x27]]
    %v477 = vstv %s476
    %v478 = vmul.f32 %v477, %v324
    %v479 = vadd.f32 %v475, %v478
    %s480 = sld [smem:[#allocation2 + $0x28]]
    %v481 = vstv %s480
    %v482 = vmul.f32 %v481, %v324
    %484 = vrot.lane.b32.xlu0 %v482, 127
    %v485 = vpop.permute.xlu0 %484
    %v487 = vadd.f32 %v479, %v485
    %s488 = sld [smem:[#allocation2 + $0x29]]
    %v489 = vstv %s488
    %v490 = vmul.f32 %v489, %v324
    %492 = vrot.lane.b32.xlu0 %v490, 126
    %v493 = vpop.permute.xlu0 %492
    %v495 = vadd.f32 %v487, %v493
    %v496 = vmax.f32 %v495, 0.0
    %v497 = vmul.f32 %v367, 0.0
    %499 = vrot.lane.b32.xlu0 %v367, 1
    %v500 = vpop.permute.xlu0 %499
    %503 = vrot.lane.b32.xlu0 %v497, 9
    %v504 = vpop.permute.xlu0 %503
    %v506 = vsel %vm67, %v497, %v500
    %v507 = vsel %vm317, %v506, %v504
    %509 = vrot.lane.b32.xlu0 %v410, 1
    %v510 = vpop.permute.xlu0 %509
    %v512 = vsel %vm67, %v497, %v510
    %v513 = vsel %vm317, %v512, %v504
    %515 = vrot.lane.b32.xlu0 %v453, 1
    %v516 = vpop.permute.xlu0 %515
    %v518 = vsel %vm67, %v497, %v516
    %v519 = vsel %vm317, %v518, %v504
    %521 = vrot.lane.b32.xlu0 %v496, 1
    %v522 = vpop.permute.xlu0 %521
    %v524 = vsel %vm67, %v497, %v522
    %v525 = vsel %vm317, %v524, %v504
    %s526 = sld [smem:[#allocation2 + $0x2a]]
    %v527 = vstv %s526
    %v528 = vmul.f32 %v507, %v527
    %s529 = sld [smem:[#allocation5 + $0x8]]
    %v530 = vstv %s529
    %v531 = vadd.f32 %v528, %v530
    %s532 = sld [smem:[#allocation2 + $0x2b]]
    %v533 = vstv %s532
    %v534 = vmul.f32 %v533, %v507
    %536 = vrot.lane.b32.xlu0 %v534, 127
    %v537 = vpop.permute.xlu0 %536
    %v539 = vadd.f32 %v531, %v537
    %s540 = sld [smem:[#allocation2 + $0x2c]]
    %v541 = vstv %s540
    %v542 = vmul.f32 %v541, %v507
    %544 = vrot.lane.b32.xlu0 %v542, 126
    %v545 = vpop.permute.xlu0 %544
    %v547 = vadd.f32 %v539, %v545
    %s548 = sld [smem:[#allocation2 + $0x2d]]
    %v549 = vstv %s548
    %v550 = vmul.f32 %v549, %v513
    %v551 = vadd.f32 %v547, %v550
    %s552 = sld [smem:[#allocation2 + $0x2e]]
    %v553 = vstv %s552
    %v554 = vmul.f32 %v553, %v513
    %556 = vrot.lane.b32.xlu0 %v554, 127
    %v557 = vpop.permute.xlu0 %556
    %v559 = vadd.f32 %v551, %v557
    %s560 = sld [smem:[#allocation2 + $0x2f]]
    %v561 = vstv %s560
    %v562 = vmul.f32 %v561, %v513
    %564 = vrot.lane.b32.xlu0 %v562, 126
    %v565 = vpop.permute.xlu0 %564
    %v567 = vadd.f32 %v559, %v565
    %s568 = sld [smem:[#allocation2 + $0x30]]
    %v569 = vstv %s568
    %v570 = vmul.f32 %v569, %v519
    %v571 = vadd.f32 %v567, %v570
    %s572 = sld [smem:[#allocation2 + $0x31]]
    %v573 = vstv %s572
    %v574 = vmul.f32 %v573, %v519
    %576 = vrot.lane.b32.xlu0 %v574, 127
    %v577 = vpop.permute.xlu0 %576
    %v579 = vadd.f32 %v571, %v577
    %s580 = sld [smem:[#allocation2 + $0x32]]
    %v581 = vstv %s580
    %v582 = vmul.f32 %v581, %v519
    %584 = vrot.lane.b32.xlu0 %v582, 126
    %v585 = vpop.permute.xlu0 %584
    %v587 = vadd.f32 %v579, %v585
    %s588 = sld [smem:[#allocation2 + $0x33]]
    %v589 = vstv %s588
    %v590 = vmul.f32 %v589, %v525
    %v591 = vadd.f32 %v587, %v590
    %s592 = sld [smem:[#allocation2 + $0x34]]
    %v593 = vstv %s592
    %v594 = vmul.f32 %v593, %v525
    %596 = vrot.lane.b32.xlu0 %v594, 127
    %v597 = vpop.permute.xlu0 %596
    %v599 = vadd.f32 %v591, %v597
    %s600 = sld [smem:[#allocation2 + $0x35]]
    %v601 = vstv %s600
    %v602 = vmul.f32 %v601, %v525
    %604 = vrot.lane.b32.xlu0 %v602, 126
    %v605 = vpop.permute.xlu0 %604
    %v607 = vadd.f32 %v599, %v605
    %v608 = vmax.f32 %v607, 0.0
    %s609 = sld [smem:[#allocation2 + $0x36]]
    %v610 = vstv %s609
    %v611 = vmul.f32 %v507, %v610
    %s612 = sld [smem:[#allocation5 + $0x9]]
    %v613 = vstv %s612
    %v614 = vadd.f32 %v611, %v613
    %s615 = sld [smem:[#allocation2 + $0x37]]
    %v616 = vstv %s615
    %v617 = vmul.f32 %v616, %v507
    %619 = vrot.lane.b32.xlu0 %v617, 127
    %v620 = vpop.permute.xlu0 %619
    %v622 = vadd.f32 %v614, %v620
    %s623 = sld [smem:[#allocation2 + $0x38]]
    %v624 = vstv %s623
    %v625 = vmul.f32 %v624, %v507
    %627 = vrot.lane.b32.xlu0 %v625, 126
    %v628 = vpop.permute.xlu0 %627
    %v630 = vadd.f32 %v622, %v628
    %s631 = sld [smem:[#allocation2 + $0x39]]
    %v632 = vstv %s631
    %v633 = vmul.f32 %v632, %v513
    %v634 = vadd.f32 %v630, %v633
    %s635 = sld [smem:[#allocation2 + $0x3a]]
    %v636 = vstv %s635
    %v637 = vmul.f32 %v636, %v513
    %639 = vrot.lane.b32.xlu0 %v637, 127
    %v640 = vpop.permute.xlu0 %639
    %v642 = vadd.f32 %v634, %v640
    %s643 = sld [smem:[#allocation2 + $0x3b]]
    %v644 = vstv %s643
    %v645 = vmul.f32 %v644, %v513
    %647 = vrot.lane.b32.xlu0 %v645, 126
    %v648 = vpop.permute.xlu0 %647
    %v650 = vadd.f32 %v642, %v648
    %s651 = sld [smem:[#allocation2 + $0x3c]]
    %v652 = vstv %s651
    %v653 = vmul.f32 %v652, %v519
    %v654 = vadd.f32 %v650, %v653
    %s655 = sld [smem:[#allocation2 + $0x3d]]
    %v656 = vstv %s655
    %v657 = vmul.f32 %v656, %v519
    %659 = vrot.lane.b32.xlu0 %v657, 127
    %v660 = vpop.permute.xlu0 %659
    %v662 = vadd.f32 %v654, %v660
    %s663 = sld [smem:[#allocation2 + $0x3e]]
    %v664 = vstv %s663
    %v665 = vmul.f32 %v664, %v519
    %667 = vrot.lane.b32.xlu0 %v665, 126
    %v668 = vpop.permute.xlu0 %667
    %v670 = vadd.f32 %v662, %v668
    %s671 = sld [smem:[#allocation2 + $0x3f]]
    %v672 = vstv %s671
    %v673 = vmul.f32 %v672, %v525
    %v674 = vadd.f32 %v670, %v673
    %s675 = sld [smem:[#allocation2 + $0x40]]
    %v676 = vstv %s675
    %v677 = vmul.f32 %v676, %v525
    %679 = vrot.lane.b32.xlu0 %v677, 127
    %v680 = vpop.permute.xlu0 %679
    %v682 = vadd.f32 %v674, %v680
    %s683 = sld [smem:[#allocation2 + $0x41]]
    %v684 = vstv %s683
    %v685 = vmul.f32 %v684, %v525
    %687 = vrot.lane.b32.xlu0 %v685, 126
    %v688 = vpop.permute.xlu0 %687
    %v690 = vadd.f32 %v682, %v688
    %v691 = vmax.f32 %v690, 0.0
    %s692 = sld [smem:[#allocation2 + $0x42]]
    %v693 = vstv %s692
    %v694 = vmul.f32 %v507, %v693
    %s695 = sld [smem:[#allocation5 + $0xa]]
    %v696 = vstv %s695
    %v697 = vadd.f32 %v694, %v696
    %s698 = sld [smem:[#allocation2 + $0x43]]
    %v699 = vstv %s698
    %v700 = vmul.f32 %v699, %v507
    %702 = vrot.lane.b32.xlu0 %v700, 127
    %v703 = vpop.permute.xlu0 %702
    %v705 = vadd.f32 %v697, %v703
    %s706 = sld [smem:[#allocation2 + $0x44]]
    %v707 = vstv %s706
    %v708 = vmul.f32 %v707, %v507
    %710 = vrot.lane.b32.xlu0 %v708, 126
    %v711 = vpop.permute.xlu0 %710
    %v713 = vadd.f32 %v705, %v711
    %s714 = sld [smem:[#allocation2 + $0x45]]
    %v715 = vstv %s714
    %v716 = vmul.f32 %v715, %v513
    %v717 = vadd.f32 %v713, %v716
    %s718 = sld [smem:[#allocation2 + $0x46]]
    %v719 = vstv %s718
    %v720 = vmul.f32 %v719, %v513
    %722 = vrot.lane.b32.xlu0 %v720, 127
    %v723 = vpop.permute.xlu0 %722
    %v725 = vadd.f32 %v717, %v723
    %s726 = sld [smem:[#allocation2 + $0x47]]
    %v727 = vstv %s726
    %v728 = vmul.f32 %v727, %v513
    %730 = vrot.lane.b32.xlu0 %v728, 126
    %v731 = vpop.permute.xlu0 %730
    %v733 = vadd.f32 %v725, %v731
    %s734 = sld [smem:[#allocation2 + $0x48]]
    %v735 = vstv %s734
    %v736 = vmul.f32 %v735, %v519
    %v737 = vadd.f32 %v733, %v736
    %s738 = sld [smem:[#allocation2 + $0x49]]
    %v739 = vstv %s738
    %v740 = vmul.f32 %v739, %v519
    %742 = vrot.lane.b32.xlu0 %v740, 127
    %v743 = vpop.permute.xlu0 %742
    %v745 = vadd.f32 %v737, %v743
    %s746 = sld [smem:[#allocation2 + $0x4a]]
    %v747 = vstv %s746
    %v748 = vmul.f32 %v747, %v519
    %750 = vrot.lane.b32.xlu0 %v748, 126
    %v751 = vpop.permute.xlu0 %750
    %v753 = vadd.f32 %v745, %v751
    %s754 = sld [smem:[#allocation2 + $0x4b]]
    %v755 = vstv %s754
    %v756 = vmul.f32 %v755, %v525
    %v757 = vadd.f32 %v753, %v756
    %s758 = sld [smem:[#allocation2 + $0x4c]]
    %v759 = vstv %s758
    %v760 = vmul.f32 %v759, %v525
    %762 = vrot.lane.b32.xlu0 %v760, 127
    %v763 = vpop.permute.xlu0 %762
    %v765 = vadd.f32 %v757, %v763
    %s766 = sld [smem:[#allocation2 + $0x4d]]
    %v767 = vstv %s766
    %v768 = vmul.f32 %v767, %v525
    %770 = vrot.lane.b32.xlu0 %v768, 126
    %v771 = vpop.permute.xlu0 %770
    %v773 = vadd.f32 %v765, %v771
    %v774 = vmax.f32 %v773, 0.0
    %s775 = sld [smem:[#allocation2 + $0x4e]]
    %v776 = vstv %s775
    %v777 = vmul.f32 %v507, %v776
    %s778 = sld [smem:[#allocation5 + $0xb]]
    %v779 = vstv %s778
    %v780 = vadd.f32 %v777, %v779
    %s781 = sld [smem:[#allocation2 + $0x4f]]
    %v782 = vstv %s781
    %v783 = vmul.f32 %v782, %v507
    %785 = vrot.lane.b32.xlu0 %v783, 127
    %v786 = vpop.permute.xlu0 %785
    %v788 = vadd.f32 %v780, %v786
    %s789 = sld [smem:[#allocation2 + $0x50]]
    %v790 = vstv %s789
    %v791 = vmul.f32 %v790, %v507
    %793 = vrot.lane.b32.xlu0 %v791, 126
    %v794 = vpop.permute.xlu0 %793
    %v796 = vadd.f32 %v788, %v794
    %s797 = sld [smem:[#allocation2 + $0x51]]
    %v798 = vstv %s797
    %v799 = vmul.f32 %v798, %v513
    %v800 = vadd.f32 %v796, %v799
    %s801 = sld [smem:[#allocation2 + $0x52]]
    %v802 = vstv %s801
    %v803 = vmul.f32 %v802, %v513
    %805 = vrot.lane.b32.xlu0 %v803, 127
    %v806 = vpop.permute.xlu0 %805
    %v808 = vadd.f32 %v800, %v806
    %s809 = sld [smem:[#allocation2 + $0x53]]
    %v810 = vstv %s809
    %v811 = vmul.f32 %v810, %v513
    %813 = vrot.lane.b32.xlu0 %v811, 126
    %v814 = vpop.permute.xlu0 %813
    %v816 = vadd.f32 %v808, %v814
    %s817 = sld [smem:[#allocation2 + $0x54]]
    %v818 = vstv %s817
    %v819 = vmul.f32 %v818, %v519
    %v820 = vadd.f32 %v816, %v819
    %s821 = sld [smem:[#allocation2 + $0x55]]
    %v822 = vstv %s821
    %v823 = vmul.f32 %v822, %v519
    %825 = vrot.lane.b32.xlu0 %v823, 127
    %v826 = vpop.permute.xlu0 %825
    %v828 = vadd.f32 %v820, %v826
    %s829 = sld [smem:[#allocation2 + $0x56]]
    %v830 = vstv %s829
    %v831 = vmul.f32 %v830, %v519
    %833 = vrot.lane.b32.xlu0 %v831, 126
    %v834 = vpop.permute.xlu0 %833
    %v836 = vadd.f32 %v828, %v834
    %s837 = sld [smem:[#allocation2 + $0x57]]
    %v838 = vstv %s837
    %v839 = vmul.f32 %v838, %v525
    %v840 = vadd.f32 %v836, %v839
    %s841 = sld [smem:[#allocation2 + $0x58]]
    %v842 = vstv %s841
    %v843 = vmul.f32 %v842, %v525
    %845 = vrot.lane.b32.xlu0 %v843, 127
    %v846 = vpop.permute.xlu0 %845
    %v848 = vadd.f32 %v840, %v846
    %s849 = sld [smem:[#allocation2 + $0x59]]
    %v850 = vstv %s849
    %v851 = vmul.f32 %v850, %v525
    %853 = vrot.lane.b32.xlu0 %v851, 126
    %v854 = vpop.permute.xlu0 %853
    %v856 = vadd.f32 %v848, %v854
    %v857 = vmax.f32 %v856, 0.0
    %v858 = vmul.f32 %v608, 0.0
    %860 = vrot.lane.b32.xlu0 %v608, 127
    %v861 = vpop.permute.xlu0 %860
    %864 = vrot.lane.b32.xlu0 %v858, 7
    %v865 = vpop.permute.xlu0 %864
    %v867 = vsel %vm265, %v861, %v865
    %v868 = vmax.f32 %v608, %v867
    %870 = vrot.lane.b32.xlu0 %v868, 127
    %v871 = vpop.permute.xlu0 %870
    %873 = vrot.lane.b32.xlu0 %v868, 126
    %v874 = vpop.permute.xlu0 %873
    %876 = vrot.lane.b32.xlu0 %v868, 125
    %v877 = vpop.permute.xlu0 %876
    %v879 = vsel %vm67, %v868, %v871
    %v880 = vsel %vm255, %v879, %v874
    %v881 = vsel %vm257, %v880, %v877
    %v882 = vmul.f32 %v691, 0.0
    %884 = vrot.lane.b32.xlu0 %v691, 127
    %v885 = vpop.permute.xlu0 %884
    %888 = vrot.lane.b32.xlu0 %v882, 7
    %v889 = vpop.permute.xlu0 %888
    %v891 = vsel %vm265, %v885, %v889
    %v892 = vmax.f32 %v691, %v891
    %894 = vrot.lane.b32.xlu0 %v892, 127
    %v895 = vpop.permute.xlu0 %894
    %897 = vrot.lane.b32.xlu0 %v892, 126
    %v898 = vpop.permute.xlu0 %897
    %900 = vrot.lane.b32.xlu0 %v892, 125
    %v901 = vpop.permute.xlu0 %900
    %v903 = vsel %vm67, %v892, %v895
    %v904 = vsel %vm255, %v903, %v898
    %v905 = vsel %vm257, %v904, %v901
    %v906 = vmul.f32 %v774, 0.0
    %908 = vrot.lane.b32.xlu0 %v774, 127
    %v909 = vpop.permute.xlu0 %908
    %912 = vrot.lane.b32.xlu0 %v906, 7
    %v913 = vpop.permute.xlu0 %912
    %v915 = vsel %vm265, %v909, %v913
    %v916 = vmax.f32 %v774, %v915
    %918 = vrot.lane.b32.xlu0 %v916, 127
    %v919 = vpop.permute.xlu0 %918
    %921 = vrot.lane.b32.xlu0 %v916, 126
    %v922 = vpop.permute.xlu0 %921
    %924 = vrot.lane.b32.xlu0 %v916, 125
    %v925 = vpop.permute.xlu0 %924
    %v927 = vsel %vm67, %v916, %v919
    %v928 = vsel %vm255, %v927, %v922
    %v929 = vsel %vm257, %v928, %v925
    %v930 = vmul.f32 %v857, 0.0
    %932 = vrot.lane.b32.xlu0 %v857, 127
    %v933 = vpop.permute.xlu0 %932
    %936 = vrot.lane.b32.xlu0 %v930, 7
    %v937 = vpop.permute.xlu0 %936
    %v939 = vsel %vm265, %v933, %v937
    %v940 = vmax.f32 %v857, %v939
    %942 = vrot.lane.b32.xlu0 %v940, 127
    %v943 = vpop.permute.xlu0 %942
    %945 = vrot.lane.b32.xlu0 %v940, 126
    %v946 = vpop.permute.xlu0 %945
    %948 = vrot.lane.b32.xlu0 %v940, 125
    %v949 = vpop.permute.xlu0 %948
    %v951 = vsel %vm67, %v940, %v943
    %v952 = vsel %vm255, %v951, %v946
    %v953 = vsel %vm257, %v952, %v949
    %955 = vrot.lane.b32.xlu0 %v905, 4
    %v956 = vpop.permute.xlu0 %955
    %959 = vrot.lane.b32.xlu0 %v929, 8
    %v960 = vpop.permute.xlu0 %959
    %963 = vrot.lane.b32.xlu0 %v953, 12
    %v964 = vpop.permute.xlu0 %963
    %v966 = vsel %vm259, %v881, %v956
    %vm967 = vcmask 64512
    %v968 = vsel %vm967, %v966, %v960
    %vm969 = vcmask 97280
    %v970 = vsel %vm969, %v968, %v964
    %vm971 = vcmask 123904
    %972 = vst.msk [vmem:[#allocation7] sm:$0x3] %vm971, %v970
    // Predicated region
    $region22: #{encoder_forward.1} parent=1 // pred_check
      _
    $region23: #{encoder_forward.1} parent=1 // pred_check_branch
      %974 = sbr.rel (0) target = $region25
    $region24: #{encoder_forward.1} parent=1 // pred_region
      %976 = vsyncadd [#allocation3], 0
      %s978 = sshll.u32 [#allocation7], 4
      %s979 = int_to_ptr.vmem [resolvable:$true] %s978
      %s980 = sshll.u32 %s3, 4
      %s981 = int_to_ptr.hbm [resolvable:$true] %s980
      %983 = dma.vmem_to_hbm [thread:$0]  %s979, 32, %s981, [#allocation3]
    $region25: #{encoder_forward.1} parent=1 // pred_fallthru
      _
    // Predicated region
    $region26: #{encoder_forward.1} parent=1 // pred_check
      _
    $region27: #{encoder_forward.1} parent=1 // pred_check_branch
      %985 = sbr.rel (0) target = $region29
    $region28: #{encoder_forward.1} parent=1 // pred_region
      %987 = dma.done [#allocation3], 32
    $region29: #{encoder_forward.1} parent=1 // pred_fallthru
      _
    %988 = vsyncpa [#allocation3], 1
    %989 = vsyncpa [#allocation4], 1
    %990 = vsyncpa [#allocation6], 1

</llo_original>
